<compile_context>
chip_gen: v5e
topology: v5e:2x2
jax: 0.10.0
libtpu: 0.0.40
codegen_flags: <defaults>
</compile_context>

<pallas_src>
import functools

import jax
import jax.numpy as jnp
from jax.experimental import pallas as pl
from jax.experimental.pallas import tpu as pltpu


def _conv3d_relu_kernel(x_ref, w_ref, b_ref, o_ref):
    # x_ref: (tD + K - 1, Hp, Wp*Ci)   packed, padded input slab (compute dtype)
    # w_ref: (K, K, Wp*Ci, W*Co)       banded (Toeplitz-over-W) weights
    # b_ref: (1, W*Co)                 bias broadcast over w positions (f32)
    # o_ref: (tD, H, W*Co)             lane-packed output block
    tD, H, WCo = o_ref.shape
    K = w_ref.shape[0]
    WpCi = w_ref.shape[2]

    acc = jnp.zeros((tD * H, WCo), jnp.float32)
    for kd in range(K):                      # static unroll: K*K MXU matmuls
        for kh in range(K):
            lhs = x_ref[kd:kd + tD, kh:kh + H, :].reshape(tD * H, WpCi)
            acc = acc + jnp.dot(lhs, w_ref[kd, kh, :, :],
                                preferred_element_type=jnp.float32)

    acc = jnp.maximum(acc + b_ref[...], 0.0)     # bias + ReLU (f32)
    o_ref[...] = acc.reshape(tD, H, WCo).astype(o_ref.dtype)


def _pick_block_d(D, K, Hp, WpCi, H, WCo, in_bytes, out_bytes, budget_bytes):
    """Largest divisor tD of D whose double-buffered blocks fit the budget."""
    best = 1
    for tD in range(1, D + 1):
        if D % tD:
            continue
        in_b = 2 * (tD + K - 1) * Hp * WpCi * in_bytes     # double-buffered input
        out_b = 2 * tD * H * WCo * out_bytes               # double-buffered output
        if in_b + out_b <= budget_bytes:
            best = tD
    return best


@functools.partial(jax.jit, static_argnames=("ksize", "block_d", "compute_dtype"))
def base_conv_forward(x_ncdhw, weight, bias, *, ksize=3, block_d=None,
                      compute_dtype=jnp.bfloat16):
    """BaseConv forward: Conv3d(k, stride=1, pad=(k-1)//2, bias) -> ReLU.

    x_ncdhw: (N, Cin, D, H, W)    -- PyTorch NCDHW layout
    weight : (Cout, Cin, K, K, K) -- PyTorch Conv3d weight layout
    bias   : (Cout,)
    returns: (N, Cout, D, H, W)
    """
    assert ksize % 2 == 1, "pad=(k-1)//2 only matches PyTorch 'same' for odd k"
    K = ksize
    pad = (K - 1) // 2
    N, Ci, D, H, W = x_ncdhw.shape
    Co = weight.shape[0]

    Dp, Hp, Wp = D + 2 * pad, H + 2 * pad, W + 2 * pad
    WpCi, WCo = Wp * Ci, W * Co
    in_bytes = jnp.dtype(compute_dtype).itemsize
    out_bytes = jnp.dtype(x_ncdhw.dtype).itemsize
    w_bytes = 2 * K * K * WpCi * WCo * in_bytes            # resident weights (x2 headroom)

    if block_d is None:
        budget = 12 * 1024 * 1024 - w_bytes                # conservative across v5e/v6e/v7x
        tD = _pick_block_d(D, K, Hp, WpCi, H, WCo, in_bytes, out_bytes,
                           max(budget, 1))
    else:
        tD = max(d for d in range(1, min(block_d, D) + 1) if D % d == 0)
    nD = D // tD
    tDp = tD + K - 1                                       # depth tile + halo

    # ---- activations: NCDHW -> padded, lane-packed, depth-halo-tiled ---------
    x = jnp.transpose(x_ncdhw, (0, 2, 3, 4, 1))            # (N, D, H, W, Ci)
    x = jnp.pad(x, ((0, 0), (pad, pad), (pad, pad), (pad, pad), (0, 0)))
    x = x.reshape(N, Dp, Hp, WpCi).astype(compute_dtype)
    if nD == 1:
        x_tiles = x[:, None]                               # no halo duplication
    else:
        d_idx = jnp.arange(nD)[:, None] * tD + jnp.arange(tDp)[None, :]
        x_tiles = x[:, d_idx]                              # (N, nD, tDp, Hp, Wp*Ci)

    # ---- weights: (Co, Ci, K, K, K) -> banded (K, K, Wp*Ci, W*Co) -------------
    w = jnp.transpose(weight, (2, 3, 4, 1, 0))             # (Kd, Kh, Kw, Ci, Co)
    wp = jnp.arange(Wp)[:, None]                           # padded w' index
    wo = jnp.arange(W)[None, :]                            # output w index
    kw = wp - wo                                           # (Wp, W) tap index
    valid = (kw >= 0) & (kw < K)
    kw_c = jnp.clip(kw, 0, K - 1)
    band = w[:, :, kw_c, :, :]                             # (K, K, Wp, W, Ci, Co)
    band = jnp.where(valid[None, None, :, :, None, None], band, 0.0)
    band = jnp.transpose(band, (0, 1, 2, 4, 3, 5))         # (K, K, Wp, Ci, W, Co)
    band = band.reshape(K, K, WpCi, WCo).astype(compute_dtype)

    # bias packed so lane index (w*Co + co) -> bias[co]
    b_packed = jnp.tile(bias.astype(jnp.float32), W).reshape(1, WCo)

    out = pl.pallas_call(
        _conv3d_relu_kernel,
        out_shape=jax.ShapeDtypeStruct((N, D, H, WCo), x_ncdhw.dtype),
        grid_spec=pltpu.PrefetchScalarGridSpec(
            num_scalar_prefetch=0,
            grid=(N, nD),
            in_specs=[
                pl.BlockSpec((None, None, tDp, Hp, WpCi),
                             lambda n, j: (n, j, 0, 0, 0)),
                # constant index_maps -> weights / bias stay VMEM-resident
                pl.BlockSpec((K, K, WpCi, WCo), lambda n, j: (0, 0, 0, 0)),
                pl.BlockSpec((1, WCo), lambda n, j: (0, 0)),
            ],
            out_specs=pl.BlockSpec((None, tD, H, WCo), lambda n, j: (n, j, 0, 0)),
        ),
        compiler_params=pltpu.CompilerParams(
            dimension_semantics=("parallel", "parallel"),
            vmem_limit_bytes=32 * 1024 * 1024),
    )(x_tiles, band, b_packed)

    # (N, D, H, W*Co) has identical memory order to NDHWC -> free reshape back.
    out = out.reshape(N, D, H, W, Co)
    return jnp.transpose(out, (0, 4, 1, 2, 3))


if __name__ == "__main__":
    key = jax.random.PRNGKey(0)
    k_x, k_w, k_b = jax.random.split(key, 3)

    # Small shapes consistent with BaseConv(in_channels=4, out_channels=8).
    N, Ci, Co, D, H, W, K = 2, 4, 8, 8, 8, 8, 3

    x = jax.random.normal(k_x, (N, Ci, D, H, W), dtype=jnp.float32)
    weight = jax.random.normal(k_w, (Co, Ci, K, K, K), dtype=jnp.float32) * 0.1
    bias = jax.random.normal(k_b, (Co,), dtype=jnp.float32) * 0.1

    out = base_conv_forward(x, weight, bias, ksize=K)
    out = jax.block_until_ready(out)
    assert out.shape == (N, Co, D, H, W)

    # Reference: XLA conv on the same bf16-rounded inputs the kernel consumes.
    x_r = x.astype(jnp.bfloat16).astype(jnp.float32)
    w_r = weight.astype(jnp.bfloat16).astype(jnp.float32)
    ref = jax.lax.conv_general_dilated(
        x_r, w_r, window_strides=(1, 1, 1), padding="SAME",
        dimension_numbers=("NCDHW", "OIDHW", "NCDHW"))
    ref = jnp.maximum(ref + bias.reshape(1, Co, 1, 1, 1), 0.0)
    assert jnp.allclose(out, ref, atol=1e-2, rtol=1e-2), float(
        jnp.max(jnp.abs(out - ref)))

    print("KERNEL_OK")
</pallas_src>

<mosaic_0001>
module attributes {stable_mosaic.version = 11 : i64} {
  func.func @_conv3d_relu_kernel(%arg0: i32, %arg1: i32, %arg2: memref<1x1x10x10x40xbf16, #tpu.memory_space<vmem>>, %arg3: memref<3x3x40x64xbf16, #tpu.memory_space<vmem>>, %arg4: memref<1x64xf32, #tpu.memory_space<vmem>>, %arg5: memref<1x8x8x64xf32, #tpu.memory_space<vmem>>) attributes {dimension_semantics = [#tpu.dimension_semantics<parallel>, #tpu.dimension_semantics<parallel>], iteration_bounds = array<i64: 2, 1>, scalar_prefetch = 0 : i64, scratch_operands = 0 : i64, tpu.core_type = #tpu.core_type<tc>, window_params = [{transform_indices = @transform_0, window_bounds = array<i64: 1, 1, 10, 10, 40>}, {pipeline_mode = #tpu.pipeline_mode<synchronous>, transform_indices = @transform_1, window_bounds = array<i64: 3, 3, 40, 64>}, {pipeline_mode = #tpu.pipeline_mode<synchronous>, transform_indices = @transform_2, window_bounds = array<i64: 1, 64>}, {transform_indices = @transform_3, window_bounds = array<i64: 1, 8, 8, 64>}]} {
    %cst = arith.constant 0.000000e+00 : f32
    %0 = vector.broadcast %cst : f32 to vector<64x64xf32>
    %c0 = arith.constant 0 : index
    %c0_0 = arith.constant 0 : index
    %c0_1 = arith.constant 0 : index
    %c0_2 = arith.constant 0 : index
    %c0_3 = arith.constant 0 : index
    %1 = vector.load %arg2[%c0, %c0_0, %c0_1, %c0_2, %c0_3] : memref<1x1x10x10x40xbf16, #tpu.memory_space<vmem>>, vector<1x1x8x8x40xbf16>
    %2 = vector.shape_cast %1 : vector<1x1x8x8x40xbf16> to vector<8x8x40xbf16>
    %3 = vector.shape_cast %2 : vector<8x8x40xbf16> to vector<64x40xbf16>
    %c0_4 = arith.constant 0 : index
    %c0_5 = arith.constant 0 : index
    %c0_6 = arith.constant 0 : index
    %c0_7 = arith.constant 0 : index
    %4 = vector.load %arg3[%c0_4, %c0_5, %c0_6, %c0_7] : memref<3x3x40x64xbf16, #tpu.memory_space<vmem>>, vector<1x1x40x64xbf16>
    %5 = vector.shape_cast %4 : vector<1x1x40x64xbf16> to vector<40x64xbf16>
    %cst_8 = arith.constant dense<0.000000e+00> : vector<64x64xf32>
    %6 = tpu.matmul %3, %5, %cst_8 {dimension_numbers = #tpu.dot_dimension_numbers<[1], [0], [0], [1], [0, 0, 1, 1], [], []>} : vector<64x40xbf16>, vector<40x64xbf16>, vector<64x64xf32> -> vector<64x64xf32>
    %7 = arith.addf %0, %6 : vector<64x64xf32>
    %c0_9 = arith.constant 0 : index
    %c0_10 = arith.constant 0 : index
    %c0_11 = arith.constant 0 : index
    %c1 = arith.constant 1 : index
    %c0_12 = arith.constant 0 : index
    %8 = vector.load %arg2[%c0_9, %c0_10, %c0_11, %c1, %c0_12] : memref<1x1x10x10x40xbf16, #tpu.memory_space<vmem>>, vector<1x1x8x8x40xbf16>
    %9 = vector.shape_cast %8 : vector<1x1x8x8x40xbf16> to vector<8x8x40xbf16>
    %10 = vector.shape_cast %9 : vector<8x8x40xbf16> to vector<64x40xbf16>
    %c0_13 = arith.constant 0 : index
    %c1_14 = arith.constant 1 : index
    %c0_15 = arith.constant 0 : index
    %c0_16 = arith.constant 0 : index
    %11 = vector.load %arg3[%c0_13, %c1_14, %c0_15, %c0_16] : memref<3x3x40x64xbf16, #tpu.memory_space<vmem>>, vector<1x1x40x64xbf16>
    %12 = vector.shape_cast %11 : vector<1x1x40x64xbf16> to vector<40x64xbf16>
    %cst_17 = arith.constant dense<0.000000e+00> : vector<64x64xf32>
    %13 = tpu.matmul %10, %12, %cst_17 {dimension_numbers = #tpu.dot_dimension_numbers<[1], [0], [0], [1], [0, 0, 1, 1], [], []>} : vector<64x40xbf16>, vector<40x64xbf16>, vector<64x64xf32> -> vector<64x64xf32>
    %14 = arith.addf %7, %13 : vector<64x64xf32>
    %c0_18 = arith.constant 0 : index
    %c0_19 = arith.constant 0 : index
    %c0_20 = arith.constant 0 : index
    %c2 = arith.constant 2 : index
    %c0_21 = arith.constant 0 : index
    %15 = vector.load %arg2[%c0_18, %c0_19, %c0_20, %c2, %c0_21] : memref<1x1x10x10x40xbf16, #tpu.memory_space<vmem>>, vector<1x1x8x8x40xbf16>
    %16 = vector.shape_cast %15 : vector<1x1x8x8x40xbf16> to vector<8x8x40xbf16>
    %17 = vector.shape_cast %16 : vector<8x8x40xbf16> to vector<64x40xbf16>
    %c0_22 = arith.constant 0 : index
    %c2_23 = arith.constant 2 : index
    %c0_24 = arith.constant 0 : index
    %c0_25 = arith.constant 0 : index
    %18 = vector.load %arg3[%c0_22, %c2_23, %c0_24, %c0_25] : memref<3x3x40x64xbf16, #tpu.memory_space<vmem>>, vector<1x1x40x64xbf16>
    %19 = vector.shape_cast %18 : vector<1x1x40x64xbf16> to vector<40x64xbf16>
    %cst_26 = arith.constant dense<0.000000e+00> : vector<64x64xf32>
    %20 = tpu.matmul %17, %19, %cst_26 {dimension_numbers = #tpu.dot_dimension_numbers<[1], [0], [0], [1], [0, 0, 1, 1], [], []>} : vector<64x40xbf16>, vector<40x64xbf16>, vector<64x64xf32> -> vector<64x64xf32>
    %21 = arith.addf %14, %20 : vector<64x64xf32>
    %c0_27 = arith.constant 0 : index
    %c0_28 = arith.constant 0 : index
    %c1_29 = arith.constant 1 : index
    %c0_30 = arith.constant 0 : index
    %c0_31 = arith.constant 0 : index
    %22 = vector.load %arg2[%c0_27, %c0_28, %c1_29, %c0_30, %c0_31] : memref<1x1x10x10x40xbf16, #tpu.memory_space<vmem>>, vector<1x1x8x8x40xbf16>
    %23 = vector.shape_cast %22 : vector<1x1x8x8x40xbf16> to vector<8x8x40xbf16>
    %24 = vector.shape_cast %23 : vector<8x8x40xbf16> to vector<64x40xbf16>
    %c1_32 = arith.constant 1 : index
    %c0_33 = arith.constant 0 : index
    %c0_34 = arith.constant 0 : index
    %c0_35 = arith.constant 0 : index
    %25 = vector.load %arg3[%c1_32, %c0_33, %c0_34, %c0_35] : memref<3x3x40x64xbf16, #tpu.memory_space<vmem>>, vector<1x1x40x64xbf16>
    %26 = vector.shape_cast %25 : vector<1x1x40x64xbf16> to vector<40x64xbf16>
    %cst_36 = arith.constant dense<0.000000e+00> : vector<64x64xf32>
    %27 = tpu.matmul %24, %26, %cst_36 {dimension_numbers = #tpu.dot_dimension_numbers<[1], [0], [0], [1], [0, 0, 1, 1], [], []>} : vector<64x40xbf16>, vector<40x64xbf16>, vector<64x64xf32> -> vector<64x64xf32>
    %28 = arith.addf %21, %27 : vector<64x64xf32>
    %c0_37 = arith.constant 0 : index
    %c0_38 = arith.constant 0 : index
    %c1_39 = arith.constant 1 : index
    %c1_40 = arith.constant 1 : index
    %c0_41 = arith.constant 0 : index
    %29 = vector.load %arg2[%c0_37, %c0_38, %c1_39, %c1_40, %c0_41] : memref<1x1x10x10x40xbf16, #tpu.memory_space<vmem>>, vector<1x1x8x8x40xbf16>
    %30 = vector.shape_cast %29 : vector<1x1x8x8x40xbf16> to vector<8x8x40xbf16>
    %31 = vector.shape_cast %30 : vector<8x8x40xbf16> to vector<64x40xbf16>
    %c1_42 = arith.constant 1 : index
    %c1_43 = arith.constant 1 : index
    %c0_44 = arith.constant 0 : index
    %c0_45 = arith.constant 0 : index
    %32 = vector.load %arg3[%c1_42, %c1_43, %c0_44, %c0_45] : memref<3x3x40x64xbf16, #tpu.memory_space<vmem>>, vector<1x1x40x64xbf16>
    %33 = vector.shape_cast %32 : vector<1x1x40x64xbf16> to vector<40x64xbf16>
    %cst_46 = arith.constant dense<0.000000e+00> : vector<64x64xf32>
    %34 = tpu.matmul %31, %33, %cst_46 {dimension_numbers = #tpu.dot_dimension_numbers<[1], [0], [0], [1], [0, 0, 1, 1], [], []>} : vector<64x40xbf16>, vector<40x64xbf16>, vector<64x64xf32> -> vector<64x64xf32>
    %35 = arith.addf %28, %34 : vector<64x64xf32>
    %c0_47 = arith.constant 0 : index
    %c0_48 = arith.constant 0 : index
    %c1_49 = arith.constant 1 : index
    %c2_50 = arith.constant 2 : index
    %c0_51 = arith.constant 0 : index
    %36 = vector.load %arg2[%c0_47, %c0_48, %c1_49, %c2_50, %c0_51] : memref<1x1x10x10x40xbf16, #tpu.memory_space<vmem>>, vector<1x1x8x8x40xbf16>
    %37 = vector.shape_cast %36 : vector<1x1x8x8x40xbf16> to vector<8x8x40xbf16>
    %38 = vector.shape_cast %37 : vector<8x8x40xbf16> to vector<64x40xbf16>
    %c1_52 = arith.constant 1 : index
    %c2_53 = arith.constant 2 : index
    %c0_54 = arith.constant 0 : index
    %c0_55 = arith.constant 0 : index
    %39 = vector.load %arg3[%c1_52, %c2_53, %c0_54, %c0_55] : memref<3x3x40x64xbf16, #tpu.memory_space<vmem>>, vector<1x1x40x64xbf16>
    %40 = vector.shape_cast %39 : vector<1x1x40x64xbf16> to vector<40x64xbf16>
    %cst_56 = arith.constant dense<0.000000e+00> : vector<64x64xf32>
    %41 = tpu.matmul %38, %40, %cst_56 {dimension_numbers = #tpu.dot_dimension_numbers<[1], [0], [0], [1], [0, 0, 1, 1], [], []>} : vector<64x40xbf16>, vector<40x64xbf16>, vector<64x64xf32> -> vector<64x64xf32>
    %42 = arith.addf %35, %41 : vector<64x64xf32>
    %c0_57 = arith.constant 0 : index
    %c0_58 = arith.constant 0 : index
    %c2_59 = arith.constant 2 : index
    %c0_60 = arith.constant 0 : index
    %c0_61 = arith.constant 0 : index
    %43 = vector.load %arg2[%c0_57, %c0_58, %c2_59, %c0_60, %c0_61] : memref<1x1x10x10x40xbf16, #tpu.memory_space<vmem>>, vector<1x1x8x8x40xbf16>
    %44 = vector.shape_cast %43 : vector<1x1x8x8x40xbf16> to vector<8x8x40xbf16>
    %45 = vector.shape_cast %44 : vector<8x8x40xbf16> to vector<64x40xbf16>
    %c2_62 = arith.constant 2 : index
    %c0_63 = arith.constant 0 : index
    %c0_64 = arith.constant 0 : index
    %c0_65 = arith.constant 0 : index
    %46 = vector.load %arg3[%c2_62, %c0_63, %c0_64, %c0_65] : memref<3x3x40x64xbf16, #tpu.memory_space<vmem>>, vector<1x1x40x64xbf16>
    %47 = vector.shape_cast %46 : vector<1x1x40x64xbf16> to vector<40x64xbf16>
    %cst_66 = arith.constant dense<0.000000e+00> : vector<64x64xf32>
    %48 = tpu.matmul %45, %47, %cst_66 {dimension_numbers = #tpu.dot_dimension_numbers<[1], [0], [0], [1], [0, 0, 1, 1], [], []>} : vector<64x40xbf16>, vector<40x64xbf16>, vector<64x64xf32> -> vector<64x64xf32>
    %49 = arith.addf %42, %48 : vector<64x64xf32>
    %c0_67 = arith.constant 0 : index
    %c0_68 = arith.constant 0 : index
    %c2_69 = arith.constant 2 : index
    %c1_70 = arith.constant 1 : index
    %c0_71 = arith.constant 0 : index
    %50 = vector.load %arg2[%c0_67, %c0_68, %c2_69, %c1_70, %c0_71] : memref<1x1x10x10x40xbf16, #tpu.memory_space<vmem>>, vector<1x1x8x8x40xbf16>
    %51 = vector.shape_cast %50 : vector<1x1x8x8x40xbf16> to vector<8x8x40xbf16>
    %52 = vector.shape_cast %51 : vector<8x8x40xbf16> to vector<64x40xbf16>
    %c2_72 = arith.constant 2 : index
    %c1_73 = arith.constant 1 : index
    %c0_74 = arith.constant 0 : index
    %c0_75 = arith.constant 0 : index
    %53 = vector.load %arg3[%c2_72, %c1_73, %c0_74, %c0_75] : memref<3x3x40x64xbf16, #tpu.memory_space<vmem>>, vector<1x1x40x64xbf16>
    %54 = vector.shape_cast %53 : vector<1x1x40x64xbf16> to vector<40x64xbf16>
    %cst_76 = arith.constant dense<0.000000e+00> : vector<64x64xf32>
    %55 = tpu.matmul %52, %54, %cst_76 {dimension_numbers = #tpu.dot_dimension_numbers<[1], [0], [0], [1], [0, 0, 1, 1], [], []>} : vector<64x40xbf16>, vector<40x64xbf16>, vector<64x64xf32> -> vector<64x64xf32>
    %56 = arith.addf %49, %55 : vector<64x64xf32>
    %c0_77 = arith.constant 0 : index
    %c0_78 = arith.constant 0 : index
    %c2_79 = arith.constant 2 : index
    %c2_80 = arith.constant 2 : index
    %c0_81 = arith.constant 0 : index
    %57 = vector.load %arg2[%c0_77, %c0_78, %c2_79, %c2_80, %c0_81] : memref<1x1x10x10x40xbf16, #tpu.memory_space<vmem>>, vector<1x1x8x8x40xbf16>
    %58 = vector.shape_cast %57 : vector<1x1x8x8x40xbf16> to vector<8x8x40xbf16>
    %59 = vector.shape_cast %58 : vector<8x8x40xbf16> to vector<64x40xbf16>
    %c2_82 = arith.constant 2 : index
    %c2_83 = arith.constant 2 : index
    %c0_84 = arith.constant 0 : index
    %c0_85 = arith.constant 0 : index
    %60 = vector.load %arg3[%c2_82, %c2_83, %c0_84, %c0_85] : memref<3x3x40x64xbf16, #tpu.memory_space<vmem>>, vector<1x1x40x64xbf16>
    %61 = vector.shape_cast %60 : vector<1x1x40x64xbf16> to vector<40x64xbf16>
    %cst_86 = arith.constant dense<0.000000e+00> : vector<64x64xf32>
    %62 = tpu.matmul %59, %61, %cst_86 {dimension_numbers = #tpu.dot_dimension_numbers<[1], [0], [0], [1], [0, 0, 1, 1], [], []>} : vector<64x40xbf16>, vector<40x64xbf16>, vector<64x64xf32> -> vector<64x64xf32>
    %63 = arith.addf %56, %62 : vector<64x64xf32>
    %c0_87 = arith.constant 0 : index
    %c0_88 = arith.constant 0 : index
    %64 = vector.load %arg4[%c0_87, %c0_88] : memref<1x64xf32, #tpu.memory_space<vmem>>, vector<1x64xf32>
    %65 = vector.broadcast %64 : vector<1x64xf32> to vector<64x64xf32>
    %66 = arith.addf %63, %65 : vector<64x64xf32>
    %cst_89 = arith.constant 0.000000e+00 : f32
    %67 = vector.broadcast %cst_89 : f32 to vector<64x64xf32>
    %68 = arith.maximumf %66, %67 : vector<64x64xf32>
    %69 = vector.shape_cast %68 : vector<64x64xf32> to vector<8x8x64xf32>
    %c0_90 = arith.constant 0 : index
    %c0_91 = arith.constant 0 : index
    %c0_92 = arith.constant 0 : index
    %c0_93 = arith.constant 0 : index
    %70 = vector.load %arg5[%c0_90, %c0_91, %c0_92, %c0_93] : memref<1x8x8x64xf32, #tpu.memory_space<vmem>>, vector<1x8x8x64xf32>
    %71 = vector.shape_cast %70 : vector<1x8x8x64xf32> to vector<8x8x64xf32>
    %72 = vector.shape_cast %69 : vector<8x8x64xf32> to vector<1x8x8x64xf32>
    tpu.vector_store %arg5[%c0_90, %c0_91, %c0_92, %c0_93], %72 {strides = array<i32>} : memref<1x8x8x64xf32, #tpu.memory_space<vmem>>, vector<1x8x8x64xf32>,
    return
  }
  func.func @transform_0(%arg0: i32, %arg1: i32) -> (i32, i32, i32, i32, i32) {
    %c0_i32 = arith.constant 0 : i32
    %c0_i32_0 = arith.constant 0 : i32
    %c0_i32_1 = arith.constant 0 : i32
    %c0_i32_2 = arith.constant 0 : i32
    return %arg0, %arg1, %c0_i32, %c0_i32_0, %c0_i32_1 : i32, i32, i32, i32, i32
  }
  func.func @transform_1(%arg0: i32, %arg1: i32) -> (i32, i32, i32, i32) {
    %c0_i32 = arith.constant 0 : i32
    %c0_i32_0 = arith.constant 0 : i32
    %c0_i32_1 = arith.constant 0 : i32
    %c0_i32_2 = arith.constant 0 : i32
    %c0_i32_3 = arith.constant 0 : i32
    return %c0_i32, %c0_i32_0, %c0_i32_1, %c0_i32_2 : i32, i32, i32, i32
  }
  func.func @transform_2(%arg0: i32, %arg1: i32) -> (i32, i32) {
    %c0_i32 = arith.constant 0 : i32
    %c0_i32_0 = arith.constant 0 : i32
    %c0_i32_1 = arith.constant 0 : i32
    return %c0_i32, %c0_i32_0 : i32, i32
  }
  func.func @transform_3(%arg0: i32, %arg1: i32) -> (i32, i32, i32, i32) {
    %c0_i32 = arith.constant 0 : i32
    %c0_i32_0 = arith.constant 0 : i32
    %c0_i32_1 = arith.constant 0 : i32
    return %arg0, %arg1, %c0_i32, %c0_i32_0 : i32, i32, i32, i32
  }
}

</mosaic_0001>

<llo_original>
// kernel: tile.8
$region0: #{tile.8}
  #allocation0 [shape = 's32[1]{0}', space=sflag, size = 0x4, scoped, tag = 'scoped memory for tile.8']
  %s0 = inlined_call_operand.vmem [shape: f32[8], index: 0, kind: input, shape index: {}]
  %s1 = inlined_call_operand.vmem [shape: f32[8,8], index: 1, kind: output, shape index: {}]
  // Predicated region
  $region2: #{tile.8} parent=0 // pred_check
    _
  $region3: #{tile.8} parent=0 // pred_check_branch
    %3 = sbr.rel (0) target = $region5
  $region4: #{tile.8} parent=0 // pred_region
    _
  $region5: #{tile.8} parent=0 // pred_fallthru
    _
  %v4 = vld [vmem:[%s0] ss:$0 sm:$0xff]
  %5 = vst [vmem:[%s1] sm:$0xff] %v4

// kernel: tile.9
$region0: #{tile.9}
  %s0 = inlined_call_operand.vmem [shape: f32[8,8], index: 0, kind: input, shape index: {}]
  %s1 = inlined_call_operand.vmem [shape: f32[1,64], index: 1, kind: output, shape index: {}]
  $region1: #{tile.9} parent=0
    #allocation0 [shape = 'u8[4096]{0}', space=vmem, size = 0x1000, scoped, tag = 'scoped mem for output reshape']
    %v2 = vld [vmem:[%s0] sm:$0x1]
    %vm3 = vcmask 64512
    %4 = vst.msk [vmem:[#allocation0] sm:$0x1] %vm3, %v2
    %s5 = scalar_lea.vmem %s0, 7
    %v6 = vld [vmem:[%s5] sm:$0x1]
    %7 = vrot.lane.b32.xlu0 %v6, 56
    %v8 = vpop.permute.xlu0 %7
    %vm9 = vcmask 523712
    %10 = vst.msk [vmem:[#allocation0] sm:$0x1] %vm9, %v8
    %s11 = scalar_lea.vmem %s0, 6
    %v12 = vld [vmem:[%s11] sm:$0x1]
    %13 = vrot.lane.b32.xlu0 %v12, 48
    %v14 = vpop.permute.xlu0 %13
    %vm15 = vcmask 458112
    %16 = vst.msk [vmem:[#allocation0] sm:$0x1] %vm15, %v14
    %s17 = scalar_lea.vmem %s0, 5
    %v18 = vld [vmem:[%s17] sm:$0x1]
    %19 = vrot.lane.b32.xlu0 %v18, 40
    %v20 = vpop.permute.xlu0 %19
    %vm21 = vcmask 392512
    %22 = vst.msk [vmem:[#allocation0] sm:$0x1] %vm21, %v20
    %s23 = scalar_lea.vmem %s0, 4
    %v24 = vld [vmem:[%s23] sm:$0x1]
    %25 = vrot.lane.b32.xlu0 %v24, 32
    %v26 = vpop.permute.xlu0 %25
    %vm27 = vcmask 326912
    %28 = vst.msk [vmem:[#allocation0] sm:$0x1] %vm27, %v26
    %s29 = scalar_lea.vmem %s0, 3
    %v30 = vld [vmem:[%s29] sm:$0x1]
    %31 = vrot.lane.b32.xlu0 %v30, 24
    %v32 = vpop.permute.xlu0 %31
    %vm33 = vcmask 261312
    %34 = vst.msk [vmem:[#allocation0] sm:$0x1] %vm33, %v32
    %s35 = scalar_lea.vmem %s0, 2
    %v36 = vld [vmem:[%s35] sm:$0x1]
    %37 = vrot.lane.b32.xlu0 %v36, 16
    %v38 = vpop.permute.xlu0 %37
    %vm39 = vcmask 195712
    %40 = vst.msk [vmem:[#allocation0] sm:$0x1] %vm39, %v38
    %s41 = scalar_lea.vmem %s0, 1
    %v42 = vld [vmem:[%s41] sm:$0x1]
    %43 = vrot.lane.b32.xlu0 %v42, 8
    %v44 = vpop.permute.xlu0 %43
    %vm45 = vcmask 130112
    %46 = vst.msk [vmem:[#allocation0] sm:$0x1] %vm45, %v44
    %s48 = ssub.s32 2, 1
    %v49 = vld [vmem:[#allocation0] sm:%s48]
    %s51 = ssub.s32 2, 1
    %52 = vst [vmem:[%s1] sm:%s51] %v49

// kernel: base_conv_forward.1
$region0: #{base_conv_forward.1}
  #allocation0 [shape = 'u32[]', space=smem, size = 0x4, offset = 0x4, fixed_abs, tag = 'smem constant byte address 0x4 - core index']
  #allocation1 [shape = 'u32[72,128]{1,0:T(1,128)}', space=vmem, size = 0x9000, scoped, tag = 'internal scratch']
  %s0 = inlined_call_operand.vmem [shape: bf16[2,1,10,10,40], index: 0, kind: input, shape index: {}]
  %s1 = inlined_call_operand.vmem [shape: bf16[3,3,40,64], index: 1, kind: input, shape index: {}]
  %s2 = inlined_call_operand.vmem [shape: f32[1,64], index: 2, kind: input, shape index: {}]
  %s3 = inlined_call_operand.vmem [shape: f32[2,8,8,64], index: 3, kind: output, shape index: {}]
  %s4 = sld [smem:[#allocation0]]
  $region45: #{base_conv_forward.1} parent=0
    _
  %s6 = ssub.s32 1, %s4
  %s7 = scalar_select 0, %s6, %s4
  loop: start=0, step=1, limit=4
  $region2: #{base_conv_forward.1} parent=0 // loop_pre_header
    _
  $region3: #{base_conv_forward.1} parent=0 // loop_header
    %s9 = sphi 0, %s13
    %p10 = scmp.ge.s32.totalorder %s9, 4
    %s16 = sphi 0, %s28
    %s17 = sphi 0, %s24
    %s18 = sphi 0, %s16
    %s19 = sphi 0, %s17
    %s20 = sphi 0, %s18
    %s21 = sphi 0, %s19
    %s33 = sphi 0, %s35
    %s36 = sphi 0, %s33
    %s37 = sphi 0, %s36
    %s53 = sphi 0, %s37
    %s57 = sphi 0, %s57
    %s59 = sphi 0, %s57
    %s60 = sphi 0, %s59
    %s74 = sphi 0, %s60
    %s78 = sphi 0, %s78
    %s80 = sphi 0, %s78
    %s81 = sphi 0, %s80
    %s95 = sphi 0, %s81
    %s103 = sphi 0, %s105
    %s106 = sphi 0, %s103
    %s107 = sphi 0, %s106
    %s123 = sphi 0, %s107
  $region4: #{base_conv_forward.1} parent=0 // loop_header_branch
    %12 = sbr.rel (%p10) target = $region8
  $region5: #{base_conv_forward.1} parent=0 // loop_body
    %s14 = ssub.s32 %s9, 1
    %s15 = ssub.s32 %s9, 2
    %s22 = sadd.s32 1, %s17
    %p23 = scmp.ge.s32.totalorder %s22, 1
    %s24 = scalar_select %p23, 0, %s22
    %s25 = sadd.s32 1, %s16
    %s26 = scalar_select %p23, %s25, %s16
    %p27 = scmp.ge.s32.totalorder %s26, 2
    %s28 = scalar_select %p27, 0, %s26
    %s29 = ssub.s32 %s16, %s28
    %s30 = ssub.s32 %s17, %s24
    %s31 = sor.u32 %s29, %s30
    %p32 = scmp.eq.s32.totalorder %s31, 0
    %s34 = sadd.s32 %s33, 1
    %s35 = scalar_select %p32, %s33, %s34
    %p38 = pneg %p32
    %p39 = scmp.eq.s32.totalorder %s9, 1
    %p40 = por %p38, %p39
    %p41 = scmp.ne.s32.totalorder %s33, %s36
    %p42 = scmp.eq.s32.totalorder %s9, 0
    %p43 = por %p41, %p42
    %p44 = scmp.ne.s32.totalorder %s33, %s36
    %p45 = scmp.eq.s32.totalorder %s14, 1
    %p46 = por %p44, %p45
    %p47 = scmp.ne.s32.totalorder %s36, %s37
    %p48 = scmp.eq.s32.totalorder %s14, 0
    %p49 = por %p47, %p48
    %p50 = scmp.ne.s32.totalorder %s36, %s37
    %p51 = scmp.eq.s32.totalorder %s15, 1
    %p52 = por %p50, %p51
    %p54 = scmp.ne.s32.totalorder %s37, %s53
    %p55 = scmp.eq.s32.totalorder %s15, 0
    %p56 = por %p54, %p55
    %s58 = sadd.s32 %s57, 1
    %p61 = scmp.eq.s32.totalorder %s9, 1
    %p62 = scmp.ne.s32.totalorder %s57, %s59
    %p63 = scmp.eq.s32.totalorder %s9, 0
    %p64 = por %p62, %p63
    %p65 = scmp.ne.s32.totalorder %s57, %s59
    %p66 = scmp.eq.s32.totalorder %s14, 1
    %p67 = por %p65, %p66
    %p68 = scmp.ne.s32.totalorder %s59, %s60
    %p69 = scmp.eq.s32.totalorder %s14, 0
    %p70 = por %p68, %p69
    %p71 = scmp.ne.s32.totalorder %s59, %s60
    %p72 = scmp.eq.s32.totalorder %s15, 1
    %p73 = por %p71, %p72
    %p75 = scmp.ne.s32.totalorder %s60, %s74
    %p76 = scmp.eq.s32.totalorder %s15, 0
    %p77 = por %p75, %p76
    %s79 = sadd.s32 %s78, 1
    %p82 = scmp.eq.s32.totalorder %s9, 1
    %p83 = scmp.ne.s32.totalorder %s78, %s80
    %p84 = scmp.eq.s32.totalorder %s9, 0
    %p85 = por %p83, %p84
    %p86 = scmp.ne.s32.totalorder %s78, %s80
    %p87 = scmp.eq.s32.totalorder %s14, 1
    %p88 = por %p86, %p87
    %p89 = scmp.ne.s32.totalorder %s80, %s81
    %p90 = scmp.eq.s32.totalorder %s14, 0
    %p91 = por %p89, %p90
    %p92 = scmp.ne.s32.totalorder %s80, %s81
    %p93 = scmp.eq.s32.totalorder %s15, 1
    %p94 = por %p92, %p93
    %p96 = scmp.ne.s32.totalorder %s81, %s95
    %p97 = scmp.eq.s32.totalorder %s15, 0
    %p98 = por %p96, %p97
    %s99 = ssub.s32 %s16, %s28
    %s100 = ssub.s32 %s17, %s24
    %s101 = sor.u32 %s99, %s100
    %p102 = scmp.eq.s32.totalorder %s101, 0
    %s104 = sadd.s32 %s103, 1
    %s105 = scalar_select %p102, %s103, %s104
    %p108 = pneg %p102
    %p109 = scmp.eq.s32.totalorder %s9, 1
    %p110 = por %p108, %p109
    %p111 = scmp.ne.s32.totalorder %s103, %s106
    %p112 = scmp.eq.s32.totalorder %s9, 0
    %p113 = por %p111, %p112
    %p114 = scmp.ne.s32.totalorder %s103, %s106
    %p115 = scmp.eq.s32.totalorder %s14, 1
    %p116 = por %p114, %p115
    %p117 = scmp.ne.s32.totalorder %s106, %s107
    %p118 = scmp.eq.s32.totalorder %s14, 0
    %p119 = por %p117, %p118
    %p120 = scmp.ne.s32.totalorder %s106, %s107
    %p121 = scmp.eq.s32.totalorder %s15, 1
    %p122 = por %p120, %p121
    %p124 = scmp.ne.s32.totalorder %s107, %s123
    %p125 = scmp.eq.s32.totalorder %s15, 0
    %p126 = por %p124, %p125
    %p127 = scmp.le.s32.totalorder 1, %s9
    %p128 = scmp.lt.s32.totalorder %s9, 3
    %p129 = pnand %p127, %p128
    %p130 = pneg %p129
    // Predicated region
    $region9: #{base_conv_forward.1} parent=5 // pred_check
      _
    $region10: #{base_conv_forward.1} parent=5 // pred_check_branch
      %132 = sbr.rel (%p129) target = $region12
    $region11: #{base_conv_forward.1} parent=5 // pred_region
      %s133 = ssub.s32 %s9, 1
      // Predicated region
      $region13: #{base_conv_forward.1} parent=11 // pred_check
        %p134 = pneg %p70
      $region14: #{base_conv_forward.1} parent=11 // pred_check_branch
        %136 = sbr.rel (%p134) target = $region16
      $region15: #{base_conv_forward.1} parent=11 // pred_region
        _
      $region16: #{base_conv_forward.1} parent=11 // pred_fallthru
        _
      // Predicated region
      $region17: #{base_conv_forward.1} parent=11 // pred_check
        %p137 = pneg %p91
      $region18: #{base_conv_forward.1} parent=11 // pred_check_branch
        %139 = sbr.rel (%p137) target = $region20
      $region19: #{base_conv_forward.1} parent=11 // pred_region
        _
      $region20: #{base_conv_forward.1} parent=11 // pred_fallthru
        _
    $region12: #{base_conv_forward.1} parent=5 // pred_fallthru
      _
    %p140 = scmp.lt.s32.totalorder %s9, 2
    // Predicated region
    $region21: #{base_conv_forward.1} parent=5 // pred_check
      %p141 = pneg %p140
    $region22: #{base_conv_forward.1} parent=5 // pred_check_branch
      %143 = sbr.rel (%p141) target = $region24
    $region23: #{base_conv_forward.1} parent=5 // pred_region
      // Predicated region
      $region25: #{base_conv_forward.1} parent=23 // pred_check
        %p144 = pneg %p43
      $region26: #{base_conv_forward.1} parent=23 // pred_check_branch
        %146 = sbr.rel (%p144) target = $region28
      $region27: #{base_conv_forward.1} parent=23 // pred_region
        %p147 = scmp.lt.s32.totalorder %s16, 1
        %s148 = scalar_select %p147, %s16, 1
        %p149 = scmp.lt.s32.totalorder %s17, 0
        %s150 = scalar_select %p149, %s17, 0
        %s151 = smul.addr %s150, 20
        %s152 = smul.addr %s148, 20
        %s153 = sadd.s32 %s151, %s152
        %s154 = smul.addr %s153, 4
        %s155 = scalar_lea.vmem %s0, %s154
      $region28: #{base_conv_forward.1} parent=23 // pred_fallthru
        _
    $region24: #{base_conv_forward.1} parent=5 // pred_fallthru
      _
    %p156 = scmp.le.s32.totalorder 1, %s9
    %p157 = scmp.lt.s32.totalorder %s9, 3
    %p158 = pnand %p156, %p157
    %p159 = pneg %p158
    // Predicated region
    $region29: #{base_conv_forward.1} parent=5 // pred_check
      _
    $region30: #{base_conv_forward.1} parent=5 // pred_check_branch
      %161 = sbr.rel (%p158) target = $region32
    $region31: #{base_conv_forward.1} parent=5 // pred_region
      %s162 = ssub.s32 %s9, 1
      %p163 = scmp.lt.s32.totalorder %s18, 1
      %s164 = scalar_select %p163, %s18, 1
      %p165 = scmp.lt.s32.totalorder %s19, 0
      %s166 = scalar_select %p165, %s19, 0
      %s167 = smul.addr %s166, 20
      %s168 = smul.addr %s164, 20
      %s169 = sadd.s32 %s167, %s168
      %s170 = smul.addr %s169, 4
      %s171 = scalar_lea.vmem %s0, %s170
      %p172 = pneg %p49
      %p173 = pneg %p46
      %p174 = pneg %p70
      %p175 = pneg %p67
      %p176 = pneg %p91
      %p177 = pneg %p88
      %p178 = pneg %p119
      %p179 = pneg %p116
      %s180 = smul.u32 8, %s19
      %p181 = scmp.lt.s32.totalorder %s18, 1
      %s182 = scalar_select %p181, %s18, 1
      %p183 = scmp.lt.s32.totalorder %s180, 7
      %s184 = scalar_select %p183, %s180, 7
      %s185 = smul.addr %s182, 8
      %s186 = sadd.s32 %s184, %s185
      %s187 = smul.addr %s186, 8
      %s188 = scalar_lea.vmem %s3, %s187
      %p189 = scmp.lt.s32.totalorder %s18, 1
      %s190 = scalar_select %p189, %s18, 1
      %p191 = scmp.lt.s32.totalorder %s19, 0
      %s192 = scalar_select %p191, %s19, 0
      %s193 = smul.addr %s192, 20
      %s194 = smul.addr %s190, 20
      %s195 = sadd.s32 %s193, %s194
      %s196 = smul.addr %s195, 4
      %s197 = scalar_lea.vmem %s0, %s196
      %s198 = smul.u32 8, %s19
      %p199 = scmp.lt.s32.totalorder %s18, 1
      %s200 = scalar_select %p199, %s18, 1
      %p201 = scmp.lt.s32.totalorder %s198, 7
      %s202 = scalar_select %p201, %s198, 7
      %s203 = smul.addr %s200, 8
      %s204 = sadd.s32 %s202, %s203
      %s205 = smul.addr %s204, 8
      %s206 = scalar_lea.vmem %s3, %s205
      %s207 = smul.u32 8, %s19
      %v209 = vld [vmem:[%s197] sm:$0xf]
      %v210 = vld [vmem:[%s197 + $0x8] sm:$0xf]
      %v211 = vld [vmem:[%s197 + $0x10] sm:$0xf]
      %v212 = vld [vmem:[%s197 + $0x18] sm:$0xf]
      %v213 = vld [vmem:[%s197 + $0x20] sm:$0xf]
      %v214 = vld [vmem:[%s197 + $0x28] sm:$0xf]
      %v215 = vld [vmem:[%s197 + $0x30] sm:$0xf]
      %v216 = vld [vmem:[%s197 + $0x38] sm:$0xf]
      %v217 = vld [vmem:[%s1] sm:$0xf]
      %v218 = vld [vmem:[%s1 + $0x4] sm:$0xf]
      %v219 = vld [vmem:[%s1 + $0x8] sm:$0xf]
      %v220 = vld [vmem:[%s1 + $0xc] sm:$0xf]
      %v221 = vld [vmem:[%s1 + $0x10] sm:$0xf]
      %v222 = vld [vmem:[%s197 + $0x4] sm:$0x1]
      %v223 = vld [vmem:[%s197 + $0xc] sm:$0x1]
      %v224 = vld [vmem:[%s197 + $0x14] sm:$0x1]
      %v225 = vld [vmem:[%s197 + $0x1c] sm:$0x1]
      %v226 = vld [vmem:[%s197 + $0x24] sm:$0x1]
      %v227 = vld [vmem:[%s197 + $0x2c] sm:$0x1]
      %v228 = vld [vmem:[%s197 + $0x34] sm:$0x1]
      %v229 = vld [vmem:[%s197 + $0x3c] sm:$0x1]
      %vm230 = vsmask.f32 3328
      %vm231 = vsmask.f32 7440
      %vm232 = vmor %vm230, %vm231
      %v234 = vshrl.u32 %v209, 16
      %v236 = vrot.slane %v234, 4
      %v237 = vshll.u32 %v209, 16
      %v239 = vrot.slane %v237, 5
      %v240 = vor.u32 %v236, %v239
      %v241 = vrot.slane %v240, 4
      %v243 = vshll.u32 %v222, 16
      %v245 = vrot.slane %v243, 5
      %v246 = vsel %vm232, %v241, %v245
      %v248 = vshrl.u32 %v210, 16
      %v250 = vrot.slane %v248, 4
      %v251 = vshll.u32 %v210, 16
      %v253 = vrot.slane %v251, 5
      %v254 = vor.u32 %v250, %v253
      %v255 = vrot.slane %v254, 4
      %v257 = vshll.u32 %v223, 16
      %v259 = vrot.slane %v257, 5
      %v260 = vsel %vm232, %v255, %v259
      %v262 = vshrl.u32 %v211, 16
      %v264 = vrot.slane %v262, 4
      %v265 = vshll.u32 %v211, 16
      %v267 = vrot.slane %v265, 5
      %v268 = vor.u32 %v264, %v267
      %v269 = vrot.slane %v268, 4
      %v271 = vshll.u32 %v224, 16
      %v273 = vrot.slane %v271, 5
      %v274 = vsel %vm232, %v269, %v273
      %v276 = vshrl.u32 %v212, 16
      %v278 = vrot.slane %v276, 4
      %v279 = vshll.u32 %v212, 16
      %v281 = vrot.slane %v279, 5
      %v282 = vor.u32 %v278, %v281
      %v283 = vrot.slane %v282, 4
      %v285 = vshll.u32 %v225, 16
      %v287 = vrot.slane %v285, 5
      %v288 = vsel %vm232, %v283, %v287
      %v290 = vshrl.u32 %v213, 16
      %v292 = vrot.slane %v290, 4
      %v293 = vshll.u32 %v213, 16
      %v295 = vrot.slane %v293, 5
      %v296 = vor.u32 %v292, %v295
      %v297 = vrot.slane %v296, 4
      %v299 = vshll.u32 %v226, 16
      %v301 = vrot.slane %v299, 5
      %v302 = vsel %vm232, %v297, %v301
      %v304 = vshrl.u32 %v214, 16
      %v306 = vrot.slane %v304, 4
      %v307 = vshll.u32 %v214, 16
      %v309 = vrot.slane %v307, 5
      %v310 = vor.u32 %v306, %v309
      %v311 = vrot.slane %v310, 4
      %v313 = vshll.u32 %v227, 16
      %v315 = vrot.slane %v313, 5
      %v316 = vsel %vm232, %v311, %v315
      %v318 = vshrl.u32 %v215, 16
      %v320 = vrot.slane %v318, 4
      %v321 = vshll.u32 %v215, 16
      %v323 = vrot.slane %v321, 5
      %v324 = vor.u32 %v320, %v323
      %v325 = vrot.slane %v324, 4
      %v327 = vshll.u32 %v228, 16
      %v329 = vrot.slane %v327, 5
      %v330 = vsel %vm232, %v325, %v329
      %v332 = vshrl.u32 %v216, 16
      %v334 = vrot.slane %v332, 4
      %v335 = vshll.u32 %v216, 16
      %v337 = vrot.slane %v335, 5
      %v338 = vor.u32 %v334, %v337
      %v339 = vrot.slane %v338, 4
      %v341 = vshll.u32 %v229, 16
      %v343 = vrot.slane %v341, 5
      %v344 = vsel %vm232, %v339, %v343
      %s345 = scalar_lea.vmem %s1, 20
      %v346 = vld [vmem:[%s345] sm:$0xf]
      %v347 = vld [vmem:[%s345 + $0x4] sm:$0xf]
      %v348 = vld [vmem:[%s345 + $0x8] sm:$0xf]
      %v349 = vld [vmem:[%s345 + $0xc] sm:$0xf]
      %v350 = vld [vmem:[%s345 + $0x10] sm:$0xf]
      %v351 = vunpack.c.l.b16 %v246
      %v352 = vunpack.c.l.b16 %v260
      %v353 = vunpack.c.l.b16 %v274
      %v354 = vunpack.c.l.b16 %v288
      %v355 = vunpack.c.l.b16 %v302
      %v356 = vunpack.c.l.b16 %v316
      %v357 = vunpack.c.l.b16 %v330
      %v358 = vunpack.c.l.b16 %v344
      %v359 = vpack.c.b16 %v352, %v351
      %v360 = vpack.c.b16 %v354, %v353
      %v361 = vpack.c.b16 %v356, %v355
      %v362 = vpack.c.b16 %v358, %v357
      %v368 = vunpack.c.l.b16 %v346
      %v369 = vunpack.c.l.b16 %v347
      %v370 = vunpack.c.l.b16 %v348
      %v371 = vunpack.c.l.b16 %v349
      %v372 = vunpack.c.l.b16 %v350
      %v373 = vpack.c.b16 %v369, %v368
      %v374 = vpack.c.b16 %v371, %v370
      %v375 = vpack.c.b16 %v372, %v372
      %vm378 = vcmask 326656
      %v380 = vsel %vm378, %v359, 0
      %v383 = vsel %vm378, %v360, 0
      %v386 = vsel %vm378, %v361, 0
      %v389 = vsel %vm378, %v362, 0
      %vm391 = vcmask 1043456
      %v393 = vsel %vm391, %v375, 0
      %395 = vmatpush.bf16.msra.mxu0 0
      %396 = vmatpush.bf16.msra.mxu0 0
      %397 = vmatpush.bf16.msra.mxu0 0
      %398 = vmatpush.bf16.msra.mxu0 0
      %399 = vmatpush.bf16.msra.mxu0 0
      %400 = vmatpush.bf16.msra.mxu0 %v393
      %401 = vmatpush.bf16.msra.mxu0 %v374
      %402 = vmatpush.bf16.msra.mxu0 %v373
      %403 = vmatmul.bf16.gmra.mxu0 %v380
      %v404 = vpop.f32.mrf.mxu0
      %v405 = vadd.f32 0.0, %v404
      %v406 = vpop.f32.mrf.mxu0
      %v407 = vadd.f32 0.0, %v406
      %408 = vmatmul.bf16.gmra.mxu0 %v383
      %v409 = vpop.f32.mrf.mxu0
      %v410 = vadd.f32 0.0, %v409
      %v411 = vpop.f32.mrf.mxu0
      %v412 = vadd.f32 0.0, %v411
      %413 = vmatmul.bf16.gmra.mxu0 %v386
      %v414 = vpop.f32.mrf.mxu0
      %v415 = vadd.f32 0.0, %v414
      %v416 = vpop.f32.mrf.mxu0
      %v417 = vadd.f32 0.0, %v416
      %418 = vmatmul.bf16.gmra.mxu0 %v389
      %v419 = vpop.f32.mrf.mxu0
      %v420 = vadd.f32 0.0, %v419
      %v421 = vpop.f32.mrf.mxu0
      %v422 = vadd.f32 0.0, %v421
      %423 = vdwg.mxu0
      %v432 = vunpack.c.l.b16 %v209
      %v433 = vunpack.c.l.b16 %v210
      %v434 = vunpack.c.l.b16 %v211
      %v435 = vunpack.c.l.b16 %v212
      %v436 = vunpack.c.l.b16 %v213
      %v437 = vunpack.c.l.b16 %v214
      %v438 = vunpack.c.l.b16 %v215
      %v439 = vunpack.c.l.b16 %v216
      %v440 = vpack.c.b16 %v433, %v432
      %v441 = vpack.c.b16 %v435, %v434
      %v442 = vpack.c.b16 %v437, %v436
      %v443 = vpack.c.b16 %v439, %v438
      %v449 = vunpack.c.l.b16 %v217
      %v450 = vunpack.c.l.b16 %v218
      %v451 = vunpack.c.l.b16 %v219
      %v452 = vunpack.c.l.b16 %v220
      %v453 = vunpack.c.l.b16 %v221
      %v454 = vpack.c.b16 %v450, %v449
      %v455 = vpack.c.b16 %v452, %v451
      %v456 = vpack.c.b16 %v453, %v453
      %v460 = vsel %vm378, %v440, 0
      %v463 = vsel %vm378, %v441, 0
      %v466 = vsel %vm378, %v442, 0
      %v469 = vsel %vm378, %v443, 0
      %v472 = vsel %vm391, %v456, 0
      %474 = vmatpush.bf16.msra.mxu0 0
      %475 = vmatpush.bf16.msra.mxu0 0
      %476 = vmatpush.bf16.msra.mxu0 0
      %477 = vmatpush.bf16.msra.mxu0 0
      %478 = vmatpush.bf16.msra.mxu0 0
      %479 = vmatpush.bf16.msra.mxu0 %v472
      %480 = vmatpush.bf16.msra.mxu0 %v455
      %481 = vmatpush.bf16.msra.mxu0 %v454
      %482 = vmatmul.bf16.gmra.mxu0 %v460
      %v483 = vpop.f32.mrf.mxu0
      %v484 = vadd.f32 %v405, %v483
      %v485 = vpop.f32.mrf.mxu0
      %v486 = vadd.f32 %v407, %v485
      %487 = vmatmul.bf16.gmra.mxu0 %v463
      %v488 = vpop.f32.mrf.mxu0
      %v489 = vadd.f32 %v410, %v488
      %v490 = vpop.f32.mrf.mxu0
      %v491 = vadd.f32 %v412, %v490
      %492 = vmatmul.bf16.gmra.mxu0 %v466
      %v493 = vpop.f32.mrf.mxu0
      %v494 = vadd.f32 %v415, %v493
      %v495 = vpop.f32.mrf.mxu0
      %v496 = vadd.f32 %v417, %v495
      %497 = vmatmul.bf16.gmra.mxu0 %v469
      %v498 = vpop.f32.mrf.mxu0
      %v499 = vadd.f32 %v420, %v498
      %v500 = vpop.f32.mrf.mxu0
      %v501 = vadd.f32 %v422, %v500
      %502 = vdwg.mxu0
      %v503 = vld [vmem:[%s197] sm:$0xe]
      %v504 = vld [vmem:[%s197 + $0x8] sm:$0xe]
      %v505 = vld [vmem:[%s197 + $0x10] sm:$0xe]
      %v506 = vld [vmem:[%s197 + $0x18] sm:$0xe]
      %v507 = vld [vmem:[%s197 + $0x20] sm:$0xe]
      %v508 = vld [vmem:[%s197 + $0x28] sm:$0xe]
      %v509 = vld [vmem:[%s197 + $0x30] sm:$0xe]
      %v510 = vld [vmem:[%s197 + $0x38] sm:$0xe]
      %vm527 = vcmask 1042432
      %vm528 = vcmask 1046532
      %vm529 = vmor %vm527, %vm528
      %v530 = vrot.slane %v503, 5
      %v531 = vrot.slane %v530, 4
      %v532 = vrot.slane %v222, 5
      %v533 = vsel %vm529, %v531, %v532
      %v534 = vrot.slane %v504, 5
      %v535 = vrot.slane %v534, 4
      %v536 = vrot.slane %v223, 5
      %v537 = vsel %vm529, %v535, %v536
      %v538 = vrot.slane %v505, 5
      %v539 = vrot.slane %v538, 4
      %v540 = vrot.slane %v224, 5
      %v541 = vsel %vm529, %v539, %v540
      %v542 = vrot.slane %v506, 5
      %v543 = vrot.slane %v542, 4
      %v544 = vrot.slane %v225, 5
      %v545 = vsel %vm529, %v543, %v544
      %v546 = vrot.slane %v507, 5
      %v547 = vrot.slane %v546, 4
      %v548 = vrot.slane %v226, 5
      %v549 = vsel %vm529, %v547, %v548
      %v550 = vrot.slane %v508, 5
      %v551 = vrot.slane %v550, 4
      %v552 = vrot.slane %v227, 5
      %v553 = vsel %vm529, %v551, %v552
      %v554 = vrot.slane %v509, 5
      %v555 = vrot.slane %v554, 4
      %v556 = vrot.slane %v228, 5
      %v557 = vsel %vm529, %v555, %v556
      %v558 = vrot.slane %v510, 5
      %v559 = vrot.slane %v558, 4
      %v560 = vrot.slane %v229, 5
      %v561 = vsel %vm529, %v559, %v560
      %s562 = scalar_lea.vmem %s1, 40
      %v563 = vld [vmem:[%s562] sm:$0xf]
      %v564 = vld [vmem:[%s562 + $0x4] sm:$0xf]
      %v565 = vld [vmem:[%s562 + $0x8] sm:$0xf]
      %v566 = vld [vmem:[%s562 + $0xc] sm:$0xf]
      %v567 = vld [vmem:[%s562 + $0x10] sm:$0xf]
      %v568 = vunpack.c.l.b16 %v533
      %v569 = vunpack.c.l.b16 %v537
      %v570 = vunpack.c.l.b16 %v541
      %v571 = vunpack.c.l.b16 %v545
      %v572 = vunpack.c.l.b16 %v549
      %v573 = vunpack.c.l.b16 %v553
      %v574 = vunpack.c.l.b16 %v557
      %v575 = vunpack.c.l.b16 %v561
      %v576 = vpack.c.b16 %v569, %v568
      %v577 = vpack.c.b16 %v571, %v570
      %v578 = vpack.c.b16 %v573, %v572
      %v579 = vpack.c.b16 %v575, %v574
      %v585 = vunpack.c.l.b16 %v563
      %v586 = vunpack.c.l.b16 %v564
      %v587 = vunpack.c.l.b16 %v565
      %v588 = vunpack.c.l.b16 %v566
      %v589 = vunpack.c.l.b16 %v567
      %v590 = vpack.c.b16 %v586, %v585
      %v591 = vpack.c.b16 %v588, %v587
      %v592 = vpack.c.b16 %v589, %v589
      %v596 = vsel %vm378, %v576, 0
      %v599 = vsel %vm378, %v577, 0
      %v602 = vsel %vm378, %v578, 0
      %v605 = vsel %vm378, %v579, 0
      %v608 = vsel %vm391, %v592, 0
      %610 = vmatpush.bf16.msra.mxu0 0
      %611 = vmatpush.bf16.msra.mxu0 0
      %612 = vmatpush.bf16.msra.mxu0 0
      %613 = vmatpush.bf16.msra.mxu0 0
      %614 = vmatpush.bf16.msra.mxu0 0
      %615 = vmatpush.bf16.msra.mxu0 %v608
      %616 = vmatpush.bf16.msra.mxu0 %v591
      %617 = vmatpush.bf16.msra.mxu0 %v590
      %618 = vmatmul.bf16.gmra.mxu0 %v596
      %v619 = vpop.f32.mrf.mxu0
      %v620 = vadd.f32 0.0, %v619
      %v621 = vpop.f32.mrf.mxu0
      %v622 = vadd.f32 0.0, %v621
      %623 = vmatmul.bf16.gmra.mxu0 %v599
      %v624 = vpop.f32.mrf.mxu0
      %v625 = vadd.f32 0.0, %v624
      %v626 = vpop.f32.mrf.mxu0
      %v627 = vadd.f32 0.0, %v626
      %628 = vmatmul.bf16.gmra.mxu0 %v602
      %v629 = vpop.f32.mrf.mxu0
      %v630 = vadd.f32 0.0, %v629
      %v631 = vpop.f32.mrf.mxu0
      %v632 = vadd.f32 0.0, %v631
      %633 = vmatmul.bf16.gmra.mxu0 %v605
      %v634 = vpop.f32.mrf.mxu0
      %v635 = vadd.f32 0.0, %v634
      %v636 = vpop.f32.mrf.mxu0
      %v637 = vadd.f32 0.0, %v636
      %638 = vdwg.mxu0
      %v639 = vadd.f32 %v484, %v620
      %v640 = vadd.f32 %v486, %v622
      %v641 = vadd.f32 %v489, %v625
      %v642 = vadd.f32 %v491, %v627
      %v643 = vadd.f32 %v494, %v630
      %v644 = vadd.f32 %v496, %v632
      %v645 = vadd.f32 %v499, %v635
      %v646 = vadd.f32 %v501, %v637
      %s647 = scalar_lea.vmem %s197, 8
      %v648 = vld [vmem:[%s647] sm:$0xf]
      %v649 = vld [vmem:[%s647 + $0x8] sm:$0xf]
      %v650 = vld [vmem:[%s647 + $0x10] sm:$0xf]
      %v651 = vld [vmem:[%s647 + $0x18] sm:$0xf]
      %v652 = vld [vmem:[%s647 + $0x20] sm:$0xf]
      %v653 = vld [vmem:[%s647 + $0x28] sm:$0xf]
      %v654 = vld [vmem:[%s647 + $0x30] sm:$0xf]
      %v655 = vld [vmem:[%s647 + $0x38] sm:$0xf]
      %s656 = scalar_lea.vmem %s1, 60
      %v657 = vld [vmem:[%s656] sm:$0xf]
      %v658 = vld [vmem:[%s656 + $0x4] sm:$0xf]
      %v659 = vld [vmem:[%s656 + $0x8] sm:$0xf]
      %v660 = vld [vmem:[%s656 + $0xc] sm:$0xf]
      %v661 = vld [vmem:[%s656 + $0x10] sm:$0xf]
      %v670 = vunpack.c.l.b16 %v648
      %v671 = vunpack.c.l.b16 %v649
      %v672 = vunpack.c.l.b16 %v650
      %v673 = vunpack.c.l.b16 %v651
      %v674 = vunpack.c.l.b16 %v652
      %v675 = vunpack.c.l.b16 %v653
      %v676 = vunpack.c.l.b16 %v654
      %v677 = vunpack.c.l.b16 %v655
      %v678 = vpack.c.b16 %v671, %v670
      %v679 = vpack.c.b16 %v673, %v672
      %v680 = vpack.c.b16 %v675, %v674
      %v681 = vpack.c.b16 %v677, %v676
      %v687 = vunpack.c.l.b16 %v657
      %v688 = vunpack.c.l.b16 %v658
      %v689 = vunpack.c.l.b16 %v659
      %v690 = vunpack.c.l.b16 %v660
      %v691 = vunpack.c.l.b16 %v661
      %v692 = vpack.c.b16 %v688, %v687
      %v693 = vpack.c.b16 %v690, %v689
      %v694 = vpack.c.b16 %v691, %v691
      %v698 = vsel %vm378, %v678, 0
      %v701 = vsel %vm378, %v679, 0
      %v704 = vsel %vm378, %v680, 0
      %v707 = vsel %vm378, %v681, 0
      %v710 = vsel %vm391, %v694, 0
      %712 = vmatpush.bf16.msra.mxu0 0
      %713 = vmatpush.bf16.msra.mxu0 0
      %714 = vmatpush.bf16.msra.mxu0 0
      %715 = vmatpush.bf16.msra.mxu0 0
      %716 = vmatpush.bf16.msra.mxu0 0
      %717 = vmatpush.bf16.msra.mxu0 %v710
      %718 = vmatpush.bf16.msra.mxu0 %v693
      %719 = vmatpush.bf16.msra.mxu0 %v692
      %720 = vmatmul.bf16.gmra.mxu0 %v698
      %v721 = vpop.f32.mrf.mxu0
      %v722 = vadd.f32 0.0, %v721
      %v723 = vpop.f32.mrf.mxu0
      %v724 = vadd.f32 0.0, %v723
      %725 = vmatmul.bf16.gmra.mxu0 %v701
      %v726 = vpop.f32.mrf.mxu0
      %v727 = vadd.f32 0.0, %v726
      %v728 = vpop.f32.mrf.mxu0
      %v729 = vadd.f32 0.0, %v728
      %730 = vmatmul.bf16.gmra.mxu0 %v704
      %v731 = vpop.f32.mrf.mxu0
      %v732 = vadd.f32 0.0, %v731
      %v733 = vpop.f32.mrf.mxu0
      %v734 = vadd.f32 0.0, %v733
      %735 = vmatmul.bf16.gmra.mxu0 %v707
      %v736 = vpop.f32.mrf.mxu0
      %v737 = vadd.f32 0.0, %v736
      %v738 = vpop.f32.mrf.mxu0
      %v739 = vadd.f32 0.0, %v738
      %740 = vdwg.mxu0
      %v741 = vadd.f32 %v639, %v722
      %v742 = vadd.f32 %v640, %v724
      %v743 = vadd.f32 %v641, %v727
      %v744 = vadd.f32 %v642, %v729
      %v745 = vadd.f32 %v643, %v732
      %v746 = vadd.f32 %v644, %v734
      %v747 = vadd.f32 %v645, %v737
      %v748 = vadd.f32 %v646, %v739
      %v749 = vld [vmem:[%s647] sm:$0xf]
      %v750 = vld [vmem:[%s647 + $0x4] sm:$0x1]
      %v751 = vld [vmem:[%s647 + $0x8] sm:$0xf]
      %v752 = vld [vmem:[%s647 + $0xc] sm:$0x1]
      %v753 = vld [vmem:[%s647 + $0x10] sm:$0xf]
      %v754 = vld [vmem:[%s647 + $0x14] sm:$0x1]
      %v755 = vld [vmem:[%s647 + $0x18] sm:$0xf]
      %v756 = vld [vmem:[%s647 + $0x1c] sm:$0x1]
      %v757 = vld [vmem:[%s647 + $0x20] sm:$0xf]
      %v758 = vld [vmem:[%s647 + $0x24] sm:$0x1]
      %v759 = vld [vmem:[%s647 + $0x28] sm:$0xf]
      %v760 = vld [vmem:[%s647 + $0x2c] sm:$0x1]
      %v761 = vld [vmem:[%s647 + $0x30] sm:$0xf]
      %v762 = vld [vmem:[%s647 + $0x34] sm:$0x1]
      %v763 = vld [vmem:[%s647 + $0x38] sm:$0xf]
      %v764 = vld [vmem:[%s647 + $0x3c] sm:$0x1]
      %v766 = vshrl.u32 %v749, 16
      %v768 = vrot.slane %v766, 4
      %v769 = vshll.u32 %v749, 16
      %v771 = vrot.slane %v769, 5
      %v772 = vor.u32 %v768, %v771
      %v773 = vrot.slane %v772, 4
      %v775 = vshll.u32 %v750, 16
      %v777 = vrot.slane %v775, 5
      %v778 = vsel %vm232, %v773, %v777
      %v780 = vshrl.u32 %v751, 16
      %v782 = vrot.slane %v780, 4
      %v783 = vshll.u32 %v751, 16
      %v785 = vrot.slane %v783, 5
      %v786 = vor.u32 %v782, %v785
      %v787 = vrot.slane %v786, 4
      %v789 = vshll.u32 %v752, 16
      %v791 = vrot.slane %v789, 5
      %v792 = vsel %vm232, %v787, %v791
      %v794 = vshrl.u32 %v753, 16
      %v796 = vrot.slane %v794, 4
      %v797 = vshll.u32 %v753, 16
      %v799 = vrot.slane %v797, 5
      %v800 = vor.u32 %v796, %v799
      %v801 = vrot.slane %v800, 4
      %v803 = vshll.u32 %v754, 16
      %v805 = vrot.slane %v803, 5
      %v806 = vsel %vm232, %v801, %v805
      %v808 = vshrl.u32 %v755, 16
      %v810 = vrot.slane %v808, 4
      %v811 = vshll.u32 %v755, 16
      %v813 = vrot.slane %v811, 5
      %v814 = vor.u32 %v810, %v813
      %v815 = vrot.slane %v814, 4
      %v817 = vshll.u32 %v756, 16
      %v819 = vrot.slane %v817, 5
      %v820 = vsel %vm232, %v815, %v819
      %v822 = vshrl.u32 %v757, 16
      %v824 = vrot.slane %v822, 4
      %v825 = vshll.u32 %v757, 16
      %v827 = vrot.slane %v825, 5
      %v828 = vor.u32 %v824, %v827
      %v829 = vrot.slane %v828, 4
      %v831 = vshll.u32 %v758, 16
      %v833 = vrot.slane %v831, 5
      %v834 = vsel %vm232, %v829, %v833
      %v836 = vshrl.u32 %v759, 16
      %v838 = vrot.slane %v836, 4
      %v839 = vshll.u32 %v759, 16
      %v841 = vrot.slane %v839, 5
      %v842 = vor.u32 %v838, %v841
      %v843 = vrot.slane %v842, 4
      %v845 = vshll.u32 %v760, 16
      %v847 = vrot.slane %v845, 5
      %v848 = vsel %vm232, %v843, %v847
      %v850 = vshrl.u32 %v761, 16
      %v852 = vrot.slane %v850, 4
      %v853 = vshll.u32 %v761, 16
      %v855 = vrot.slane %v853, 5
      %v856 = vor.u32 %v852, %v855
      %v857 = vrot.slane %v856, 4
      %v859 = vshll.u32 %v762, 16
      %v861 = vrot.slane %v859, 5
      %v862 = vsel %vm232, %v857, %v861
      %v864 = vshrl.u32 %v763, 16
      %v866 = vrot.slane %v864, 4
      %v867 = vshll.u32 %v763, 16
      %v869 = vrot.slane %v867, 5
      %v870 = vor.u32 %v866, %v869
      %v871 = vrot.slane %v870, 4
      %v873 = vshll.u32 %v764, 16
      %v875 = vrot.slane %v873, 5
      %v876 = vsel %vm232, %v871, %v875
      %s877 = scalar_lea.vmem %s1, 80
      %v878 = vld [vmem:[%s877] sm:$0xf]
      %v879 = vld [vmem:[%s877 + $0x4] sm:$0xf]
      %v880 = vld [vmem:[%s877 + $0x8] sm:$0xf]
      %v881 = vld [vmem:[%s877 + $0xc] sm:$0xf]
      %v882 = vld [vmem:[%s877 + $0x10] sm:$0xf]
      %v883 = vunpack.c.l.b16 %v778
      %v884 = vunpack.c.l.b16 %v792
      %v885 = vunpack.c.l.b16 %v806
      %v886 = vunpack.c.l.b16 %v820
      %v887 = vunpack.c.l.b16 %v834
      %v888 = vunpack.c.l.b16 %v848
      %v889 = vunpack.c.l.b16 %v862
      %v890 = vunpack.c.l.b16 %v876
      %v891 = vpack.c.b16 %v884, %v883
      %v892 = vpack.c.b16 %v886, %v885
      %v893 = vpack.c.b16 %v888, %v887
      %v894 = vpack.c.b16 %v890, %v889
      %v900 = vunpack.c.l.b16 %v878
      %v901 = vunpack.c.l.b16 %v879
      %v902 = vunpack.c.l.b16 %v880
      %v903 = vunpack.c.l.b16 %v881
      %v904 = vunpack.c.l.b16 %v882
      %v905 = vpack.c.b16 %v901, %v900
      %v906 = vpack.c.b16 %v903, %v902
      %v907 = vpack.c.b16 %v904, %v904
      %v911 = vsel %vm378, %v891, 0
      %v914 = vsel %vm378, %v892, 0
      %v917 = vsel %vm378, %v893, 0
      %v920 = vsel %vm378, %v894, 0
      %v923 = vsel %vm391, %v907, 0
      %925 = vmatpush.bf16.msra.mxu0 0
      %926 = vmatpush.bf16.msra.mxu0 0
      %927 = vmatpush.bf16.msra.mxu0 0
      %928 = vmatpush.bf16.msra.mxu0 0
      %929 = vmatpush.bf16.msra.mxu0 0
      %930 = vmatpush.bf16.msra.mxu0 %v923
      %931 = vmatpush.bf16.msra.mxu0 %v906
      %932 = vmatpush.bf16.msra.mxu0 %v905
      %933 = vmatmul.bf16.gmra.mxu0 %v911
      %v934 = vpop.f32.mrf.mxu0
      %v935 = vadd.f32 0.0, %v934
      %v936 = vpop.f32.mrf.mxu0
      %v937 = vadd.f32 0.0, %v936
      %938 = vmatmul.bf16.gmra.mxu0 %v914
      %v939 = vpop.f32.mrf.mxu0
      %v940 = vadd.f32 0.0, %v939
      %v941 = vpop.f32.mrf.mxu0
      %v942 = vadd.f32 0.0, %v941
      %943 = vmatmul.bf16.gmra.mxu0 %v917
      %v944 = vpop.f32.mrf.mxu0
      %v945 = vadd.f32 0.0, %v944
      %v946 = vpop.f32.mrf.mxu0
      %v947 = vadd.f32 0.0, %v946
      %948 = vmatmul.bf16.gmra.mxu0 %v920
      %v949 = vpop.f32.mrf.mxu0
      %v950 = vadd.f32 0.0, %v949
      %v951 = vpop.f32.mrf.mxu0
      %v952 = vadd.f32 0.0, %v951
      %953 = vdwg.mxu0
      %v954 = vadd.f32 %v741, %v935
      %v955 = vadd.f32 %v742, %v937
      %v956 = vadd.f32 %v743, %v940
      %v957 = vadd.f32 %v744, %v942
      %v958 = vadd.f32 %v745, %v945
      %v959 = vadd.f32 %v746, %v947
      %v960 = vadd.f32 %v747, %v950
      %v961 = vadd.f32 %v748, %v952
      %v962 = vld [vmem:[%s647] sm:$0xe]
      %v963 = vld [vmem:[%s647 + $0x8] sm:$0xe]
      %v964 = vld [vmem:[%s647 + $0x10] sm:$0xe]
      %v965 = vld [vmem:[%s647 + $0x18] sm:$0xe]
      %v966 = vld [vmem:[%s647 + $0x20] sm:$0xe]
      %v967 = vld [vmem:[%s647 + $0x28] sm:$0xe]
      %v968 = vld [vmem:[%s647 + $0x30] sm:$0xe]
      %v969 = vld [vmem:[%s647 + $0x38] sm:$0xe]
      %v986 = vrot.slane %v962, 5
      %v987 = vrot.slane %v986, 4
      %v988 = vrot.slane %v750, 5
      %v989 = vsel %vm529, %v987, %v988
      %v990 = vrot.slane %v963, 5
      %v991 = vrot.slane %v990, 4
      %v992 = vrot.slane %v752, 5
      %v993 = vsel %vm529, %v991, %v992
      %v994 = vrot.slane %v964, 5
      %v995 = vrot.slane %v994, 4
      %v996 = vrot.slane %v754, 5
      %v997 = vsel %vm529, %v995, %v996
      %v998 = vrot.slane %v965, 5
      %v999 = vrot.slane %v998, 4
      %v1000 = vrot.slane %v756, 5
      %v1001 = vsel %vm529, %v999, %v1000
      %v1002 = vrot.slane %v966, 5
      %v1003 = vrot.slane %v1002, 4
      %v1004 = vrot.slane %v758, 5
      %v1005 = vsel %vm529, %v1003, %v1004
      %v1006 = vrot.slane %v967, 5
      %v1007 = vrot.slane %v1006, 4
      %v1008 = vrot.slane %v760, 5
      %v1009 = vsel %vm529, %v1007, %v1008
      %v1010 = vrot.slane %v968, 5
      %v1011 = vrot.slane %v1010, 4
      %v1012 = vrot.slane %v762, 5
      %v1013 = vsel %vm529, %v1011, %v1012
      %v1014 = vrot.slane %v969, 5
      %v1015 = vrot.slane %v1014, 4
      %v1016 = vrot.slane %v764, 5
      %v1017 = vsel %vm529, %v1015, %v1016
      %s1018 = scalar_lea.vmem %s1, 100
      %v1019 = vld [vmem:[%s1018] sm:$0xf]
      %v1020 = vld [vmem:[%s1018 + $0x4] sm:$0xf]
      %v1021 = vld [vmem:[%s1018 + $0x8] sm:$0xf]
      %v1022 = vld [vmem:[%s1018 + $0xc] sm:$0xf]
      %v1023 = vld [vmem:[%s1018 + $0x10] sm:$0xf]
      %v1024 = vunpack.c.l.b16 %v989
      %v1025 = vunpack.c.l.b16 %v993
      %v1026 = vunpack.c.l.b16 %v997
      %v1027 = vunpack.c.l.b16 %v1001
      %v1028 = vunpack.c.l.b16 %v1005
      %v1029 = vunpack.c.l.b16 %v1009
      %v1030 = vunpack.c.l.b16 %v1013
      %v1031 = vunpack.c.l.b16 %v1017
      %v1032 = vpack.c.b16 %v1025, %v1024
      %v1033 = vpack.c.b16 %v1027, %v1026
      %v1034 = vpack.c.b16 %v1029, %v1028
      %v1035 = vpack.c.b16 %v1031, %v1030
      %v1041 = vunpack.c.l.b16 %v1019
      %v1042 = vunpack.c.l.b16 %v1020
      %v1043 = vunpack.c.l.b16 %v1021
      %v1044 = vunpack.c.l.b16 %v1022
      %v1045 = vunpack.c.l.b16 %v1023
      %v1046 = vpack.c.b16 %v1042, %v1041
      %v1047 = vpack.c.b16 %v1044, %v1043
      %v1048 = vpack.c.b16 %v1045, %v1045
      %v1052 = vsel %vm378, %v1032, 0
      %v1055 = vsel %vm378, %v1033, 0
      %v1058 = vsel %vm378, %v1034, 0
      %v1061 = vsel %vm378, %v1035, 0
      %v1064 = vsel %vm391, %v1048, 0
      %1066 = vmatpush.bf16.msra.mxu0 0
      %1067 = vmatpush.bf16.msra.mxu0 0
      %1068 = vmatpush.bf16.msra.mxu0 0
      %1069 = vmatpush.bf16.msra.mxu0 0
      %1070 = vmatpush.bf16.msra.mxu0 0
      %1071 = vmatpush.bf16.msra.mxu0 %v1064
      %1072 = vmatpush.bf16.msra.mxu0 %v1047
      %1073 = vmatpush.bf16.msra.mxu0 %v1046
      %1074 = vmatmul.bf16.gmra.mxu0 %v1052
      %v1075 = vpop.f32.mrf.mxu0
      %v1076 = vadd.f32 0.0, %v1075
      %v1077 = vpop.f32.mrf.mxu0
      %v1078 = vadd.f32 0.0, %v1077
      %1079 = vmatmul.bf16.gmra.mxu0 %v1055
      %v1080 = vpop.f32.mrf.mxu0
      %v1081 = vadd.f32 0.0, %v1080
      %v1082 = vpop.f32.mrf.mxu0
      %v1083 = vadd.f32 0.0, %v1082
      %1084 = vmatmul.bf16.gmra.mxu0 %v1058
      %v1085 = vpop.f32.mrf.mxu0
      %v1086 = vadd.f32 0.0, %v1085
      %v1087 = vpop.f32.mrf.mxu0
      %v1088 = vadd.f32 0.0, %v1087
      %1089 = vmatmul.bf16.gmra.mxu0 %v1061
      %v1090 = vpop.f32.mrf.mxu0
      %v1091 = vadd.f32 0.0, %v1090
      %v1092 = vpop.f32.mrf.mxu0
      %v1093 = vadd.f32 0.0, %v1092
      %1094 = vdwg.mxu0
      %v1095 = vadd.f32 %v954, %v1076
      %v1096 = vadd.f32 %v955, %v1078
      %v1097 = vadd.f32 %v956, %v1081
      %v1098 = vadd.f32 %v957, %v1083
      %v1099 = vadd.f32 %v958, %v1086
      %v1100 = vadd.f32 %v959, %v1088
      %v1101 = vadd.f32 %v960, %v1091
      %v1102 = vadd.f32 %v961, %v1093
      %s1103 = scalar_lea.vmem %s197, 16
      %v1104 = vld [vmem:[%s1103] sm:$0xf]
      %v1105 = vld [vmem:[%s1103 + $0x8] sm:$0xf]
      %v1106 = vld [vmem:[%s1103 + $0x10] sm:$0xf]
      %v1107 = vld [vmem:[%s1103 + $0x18] sm:$0xf]
      %v1108 = vld [vmem:[%s1103 + $0x20] sm:$0xf]
      %v1109 = vld [vmem:[%s1103 + $0x28] sm:$0xf]
      %v1110 = vld [vmem:[%s1103 + $0x30] sm:$0xf]
      %v1111 = vld [vmem:[%s1103 + $0x38] sm:$0xf]
      %s1112 = scalar_lea.vmem %s1, 120
      %v1113 = vld [vmem:[%s1112] sm:$0xf]
      %v1114 = vld [vmem:[%s1112 + $0x4] sm:$0xf]
      %v1115 = vld [vmem:[%s1112 + $0x8] sm:$0xf]
      %v1116 = vld [vmem:[%s1112 + $0xc] sm:$0xf]
      %v1117 = vld [vmem:[%s1112 + $0x10] sm:$0xf]
      %v1126 = vunpack.c.l.b16 %v1104
      %v1127 = vunpack.c.l.b16 %v1105
      %v1128 = vunpack.c.l.b16 %v1106
      %v1129 = vunpack.c.l.b16 %v1107
      %v1130 = vunpack.c.l.b16 %v1108
      %v1131 = vunpack.c.l.b16 %v1109
      %v1132 = vunpack.c.l.b16 %v1110
      %v1133 = vunpack.c.l.b16 %v1111
      %v1134 = vpack.c.b16 %v1127, %v1126
      %v1135 = vpack.c.b16 %v1129, %v1128
      %v1136 = vpack.c.b16 %v1131, %v1130
      %v1137 = vpack.c.b16 %v1133, %v1132
      %v1143 = vunpack.c.l.b16 %v1113
      %v1144 = vunpack.c.l.b16 %v1114
      %v1145 = vunpack.c.l.b16 %v1115
      %v1146 = vunpack.c.l.b16 %v1116
      %v1147 = vunpack.c.l.b16 %v1117
      %v1148 = vpack.c.b16 %v1144, %v1143
      %v1149 = vpack.c.b16 %v1146, %v1145
      %v1150 = vpack.c.b16 %v1147, %v1147
      %v1154 = vsel %vm378, %v1134, 0
      %v1157 = vsel %vm378, %v1135, 0
      %v1160 = vsel %vm378, %v1136, 0
      %v1163 = vsel %vm378, %v1137, 0
      %v1166 = vsel %vm391, %v1150, 0
      %1168 = vmatpush.bf16.msra.mxu0 0
      %1169 = vmatpush.bf16.msra.mxu0 0
      %1170 = vmatpush.bf16.msra.mxu0 0
      %1171 = vmatpush.bf16.msra.mxu0 0
      %1172 = vmatpush.bf16.msra.mxu0 0
      %1173 = vmatpush.bf16.msra.mxu0 %v1166
      %1174 = vmatpush.bf16.msra.mxu0 %v1149
      %1175 = vmatpush.bf16.msra.mxu0 %v1148
      %1176 = vmatmul.bf16.gmra.mxu0 %v1154
      %v1177 = vpop.f32.mrf.mxu0
      %v1178 = vadd.f32 0.0, %v1177
      %v1179 = vpop.f32.mrf.mxu0
      %v1180 = vadd.f32 0.0, %v1179
      %1181 = vmatmul.bf16.gmra.mxu0 %v1157
      %v1182 = vpop.f32.mrf.mxu0
      %v1183 = vadd.f32 0.0, %v1182
      %v1184 = vpop.f32.mrf.mxu0
      %v1185 = vadd.f32 0.0, %v1184
      %1186 = vmatmul.bf16.gmra.mxu0 %v1160
      %v1187 = vpop.f32.mrf.mxu0
      %v1188 = vadd.f32 0.0, %v1187
      %v1189 = vpop.f32.mrf.mxu0
      %v1190 = vadd.f32 0.0, %v1189
      %1191 = vmatmul.bf16.gmra.mxu0 %v1163
      %v1192 = vpop.f32.mrf.mxu0
      %v1193 = vadd.f32 0.0, %v1192
      %v1194 = vpop.f32.mrf.mxu0
      %v1195 = vadd.f32 0.0, %v1194
      %1196 = vdwg.mxu0
      %v1197 = vadd.f32 %v1095, %v1178
      %v1198 = vadd.f32 %v1096, %v1180
      %v1199 = vadd.f32 %v1097, %v1183
      %v1200 = vadd.f32 %v1098, %v1185
      %v1201 = vadd.f32 %v1099, %v1188
      %v1202 = vadd.f32 %v1100, %v1190
      %v1203 = vadd.f32 %v1101, %v1193
      %v1204 = vadd.f32 %v1102, %v1195
      %v1205 = vld [vmem:[%s1103] sm:$0xf]
      %v1206 = vld [vmem:[%s1103 + $0x4] sm:$0x1]
      %v1207 = vld [vmem:[%s1103 + $0x8] sm:$0xf]
      %v1208 = vld [vmem:[%s1103 + $0xc] sm:$0x1]
      %v1209 = vld [vmem:[%s1103 + $0x10] sm:$0xf]
      %v1210 = vld [vmem:[%s1103 + $0x14] sm:$0x1]
      %v1211 = vld [vmem:[%s1103 + $0x18] sm:$0xf]
      %v1212 = vld [vmem:[%s1103 + $0x1c] sm:$0x1]
      %v1213 = vld [vmem:[%s1103 + $0x20] sm:$0xf]
      %v1214 = vld [vmem:[%s1103 + $0x24] sm:$0x1]
      %v1215 = vld [vmem:[%s1103 + $0x28] sm:$0xf]
      %v1216 = vld [vmem:[%s1103 + $0x2c] sm:$0x1]
      %v1217 = vld [vmem:[%s1103 + $0x30] sm:$0xf]
      %v1218 = vld [vmem:[%s1103 + $0x34] sm:$0x1]
      %v1219 = vld [vmem:[%s1103 + $0x38] sm:$0xf]
      %v1220 = vld [vmem:[%s1103 + $0x3c] sm:$0x1]
      %v1222 = vshrl.u32 %v1205, 16
      %v1224 = vrot.slane %v1222, 4
      %v1225 = vshll.u32 %v1205, 16
      %v1227 = vrot.slane %v1225, 5
      %v1228 = vor.u32 %v1224, %v1227
      %v1229 = vrot.slane %v1228, 4
      %v1231 = vshll.u32 %v1206, 16
      %v1233 = vrot.slane %v1231, 5
      %v1234 = vsel %vm232, %v1229, %v1233
      %v1236 = vshrl.u32 %v1207, 16
      %v1238 = vrot.slane %v1236, 4
      %v1239 = vshll.u32 %v1207, 16
      %v1241 = vrot.slane %v1239, 5
      %v1242 = vor.u32 %v1238, %v1241
      %v1243 = vrot.slane %v1242, 4
      %v1245 = vshll.u32 %v1208, 16
      %v1247 = vrot.slane %v1245, 5
      %v1248 = vsel %vm232, %v1243, %v1247
      %v1250 = vshrl.u32 %v1209, 16
      %v1252 = vrot.slane %v1250, 4
      %v1253 = vshll.u32 %v1209, 16
      %v1255 = vrot.slane %v1253, 5
      %v1256 = vor.u32 %v1252, %v1255
      %v1257 = vrot.slane %v1256, 4
      %v1259 = vshll.u32 %v1210, 16
      %v1261 = vrot.slane %v1259, 5
      %v1262 = vsel %vm232, %v1257, %v1261
      %v1264 = vshrl.u32 %v1211, 16
      %v1266 = vrot.slane %v1264, 4
      %v1267 = vshll.u32 %v1211, 16
      %v1269 = vrot.slane %v1267, 5
      %v1270 = vor.u32 %v1266, %v1269
      %v1271 = vrot.slane %v1270, 4
      %v1273 = vshll.u32 %v1212, 16
      %v1275 = vrot.slane %v1273, 5
      %v1276 = vsel %vm232, %v1271, %v1275
      %v1278 = vshrl.u32 %v1213, 16
      %v1280 = vrot.slane %v1278, 4
      %v1281 = vshll.u32 %v1213, 16
      %v1283 = vrot.slane %v1281, 5
      %v1284 = vor.u32 %v1280, %v1283
      %v1285 = vrot.slane %v1284, 4
      %v1287 = vshll.u32 %v1214, 16
      %v1289 = vrot.slane %v1287, 5
      %v1290 = vsel %vm232, %v1285, %v1289
      %v1292 = vshrl.u32 %v1215, 16
      %v1294 = vrot.slane %v1292, 4
      %v1295 = vshll.u32 %v1215, 16
      %v1297 = vrot.slane %v1295, 5
      %v1298 = vor.u32 %v1294, %v1297
      %v1299 = vrot.slane %v1298, 4
      %v1301 = vshll.u32 %v1216, 16
      %v1303 = vrot.slane %v1301, 5
      %v1304 = vsel %vm232, %v1299, %v1303
      %v1306 = vshrl.u32 %v1217, 16
      %v1308 = vrot.slane %v1306, 4
      %v1309 = vshll.u32 %v1217, 16
      %v1311 = vrot.slane %v1309, 5
      %v1312 = vor.u32 %v1308, %v1311
      %v1313 = vrot.slane %v1312, 4
      %v1315 = vshll.u32 %v1218, 16
      %v1317 = vrot.slane %v1315, 5
      %v1318 = vsel %vm232, %v1313, %v1317
      %v1320 = vshrl.u32 %v1219, 16
      %v1322 = vrot.slane %v1320, 4
      %v1323 = vshll.u32 %v1219, 16
      %v1325 = vrot.slane %v1323, 5
      %v1326 = vor.u32 %v1322, %v1325
      %v1327 = vrot.slane %v1326, 4
      %v1329 = vshll.u32 %v1220, 16
      %v1331 = vrot.slane %v1329, 5
      %v1332 = vsel %vm232, %v1327, %v1331
      %s1333 = scalar_lea.vmem %s1, 140
      %v1334 = vld [vmem:[%s1333] sm:$0xf]
      %v1335 = vld [vmem:[%s1333 + $0x4] sm:$0xf]
      %v1336 = vld [vmem:[%s1333 + $0x8] sm:$0xf]
      %v1337 = vld [vmem:[%s1333 + $0xc] sm:$0xf]
      %v1338 = vld [vmem:[%s1333 + $0x10] sm:$0xf]
      %v1339 = vunpack.c.l.b16 %v1234
      %v1340 = vunpack.c.l.b16 %v1248
      %v1341 = vunpack.c.l.b16 %v1262
      %v1342 = vunpack.c.l.b16 %v1276
      %v1343 = vunpack.c.l.b16 %v1290
      %v1344 = vunpack.c.l.b16 %v1304
      %v1345 = vunpack.c.l.b16 %v1318
      %v1346 = vunpack.c.l.b16 %v1332
      %v1347 = vpack.c.b16 %v1340, %v1339
      %v1348 = vpack.c.b16 %v1342, %v1341
      %v1349 = vpack.c.b16 %v1344, %v1343
      %v1350 = vpack.c.b16 %v1346, %v1345
      %v1356 = vunpack.c.l.b16 %v1334
      %v1357 = vunpack.c.l.b16 %v1335
      %v1358 = vunpack.c.l.b16 %v1336
      %v1359 = vunpack.c.l.b16 %v1337
      %v1360 = vunpack.c.l.b16 %v1338
      %v1361 = vpack.c.b16 %v1357, %v1356
      %v1362 = vpack.c.b16 %v1359, %v1358
      %v1363 = vpack.c.b16 %v1360, %v1360
      %v1367 = vsel %vm378, %v1347, 0
      %v1370 = vsel %vm378, %v1348, 0
      %v1373 = vsel %vm378, %v1349, 0
      %v1376 = vsel %vm378, %v1350, 0
      %v1379 = vsel %vm391, %v1363, 0
      %1381 = vmatpush.bf16.msra.mxu0 0
      %1382 = vmatpush.bf16.msra.mxu0 0
      %1383 = vmatpush.bf16.msra.mxu0 0
      %1384 = vmatpush.bf16.msra.mxu0 0
      %1385 = vmatpush.bf16.msra.mxu0 0
      %1386 = vmatpush.bf16.msra.mxu0 %v1379
      %1387 = vmatpush.bf16.msra.mxu0 %v1362
      %1388 = vmatpush.bf16.msra.mxu0 %v1361
      %1389 = vmatmul.bf16.gmra.mxu0 %v1367
      %v1390 = vpop.f32.mrf.mxu0
      %v1391 = vadd.f32 0.0, %v1390
      %v1392 = vpop.f32.mrf.mxu0
      %v1393 = vadd.f32 0.0, %v1392
      %1394 = vmatmul.bf16.gmra.mxu0 %v1370
      %v1395 = vpop.f32.mrf.mxu0
      %v1396 = vadd.f32 0.0, %v1395
      %v1397 = vpop.f32.mrf.mxu0
      %v1398 = vadd.f32 0.0, %v1397
      %1399 = vmatmul.bf16.gmra.mxu0 %v1373
      %v1400 = vpop.f32.mrf.mxu0
      %v1401 = vadd.f32 0.0, %v1400
      %v1402 = vpop.f32.mrf.mxu0
      %v1403 = vadd.f32 0.0, %v1402
      %1404 = vmatmul.bf16.gmra.mxu0 %v1376
      %v1405 = vpop.f32.mrf.mxu0
      %v1406 = vadd.f32 0.0, %v1405
      %v1407 = vpop.f32.mrf.mxu0
      %v1408 = vadd.f32 0.0, %v1407
      %1409 = vdwg.mxu0
      %v1410 = vadd.f32 %v1197, %v1391
      %v1411 = vadd.f32 %v1198, %v1393
      %v1412 = vadd.f32 %v1199, %v1396
      %v1413 = vadd.f32 %v1200, %v1398
      %v1414 = vadd.f32 %v1201, %v1401
      %v1415 = vadd.f32 %v1202, %v1403
      %v1416 = vadd.f32 %v1203, %v1406
      %v1417 = vadd.f32 %v1204, %v1408
      %v1418 = vld [vmem:[%s1103] sm:$0xe]
      %v1419 = vld [vmem:[%s1103 + $0x8] sm:$0xe]
      %v1420 = vld [vmem:[%s1103 + $0x10] sm:$0xe]
      %v1421 = vld [vmem:[%s1103 + $0x18] sm:$0xe]
      %v1422 = vld [vmem:[%s1103 + $0x20] sm:$0xe]
      %v1423 = vld [vmem:[%s1103 + $0x28] sm:$0xe]
      %v1424 = vld [vmem:[%s1103 + $0x30] sm:$0xe]
      %v1425 = vld [vmem:[%s1103 + $0x38] sm:$0xe]
      %v1442 = vrot.slane %v1418, 5
      %v1443 = vrot.slane %v1442, 4
      %v1444 = vrot.slane %v1206, 5
      %v1445 = vsel %vm529, %v1443, %v1444
      %v1446 = vrot.slane %v1419, 5
      %v1447 = vrot.slane %v1446, 4
      %v1448 = vrot.slane %v1208, 5
      %v1449 = vsel %vm529, %v1447, %v1448
      %v1450 = vrot.slane %v1420, 5
      %v1451 = vrot.slane %v1450, 4
      %v1452 = vrot.slane %v1210, 5
      %v1453 = vsel %vm529, %v1451, %v1452
      %v1454 = vrot.slane %v1421, 5
      %v1455 = vrot.slane %v1454, 4
      %v1456 = vrot.slane %v1212, 5
      %v1457 = vsel %vm529, %v1455, %v1456
      %v1458 = vrot.slane %v1422, 5
      %v1459 = vrot.slane %v1458, 4
      %v1460 = vrot.slane %v1214, 5
      %v1461 = vsel %vm529, %v1459, %v1460
      %v1462 = vrot.slane %v1423, 5
      %v1463 = vrot.slane %v1462, 4
      %v1464 = vrot.slane %v1216, 5
      %v1465 = vsel %vm529, %v1463, %v1464
      %v1466 = vrot.slane %v1424, 5
      %v1467 = vrot.slane %v1466, 4
      %v1468 = vrot.slane %v1218, 5
      %v1469 = vsel %vm529, %v1467, %v1468
      %v1470 = vrot.slane %v1425, 5
      %v1471 = vrot.slane %v1470, 4
      %v1472 = vrot.slane %v1220, 5
      %v1473 = vsel %vm529, %v1471, %v1472
      %s1474 = scalar_lea.vmem %s1, 160
      %v1475 = vld [vmem:[%s1474] sm:$0xf]
      %v1476 = vld [vmem:[%s1474 + $0x4] sm:$0xf]
      %v1477 = vld [vmem:[%s1474 + $0x8] sm:$0xf]
      %v1478 = vld [vmem:[%s1474 + $0xc] sm:$0xf]
      %v1479 = vld [vmem:[%s1474 + $0x10] sm:$0xf]
      %v1480 = vunpack.c.l.b16 %v1445
      %v1481 = vunpack.c.l.b16 %v1449
      %v1482 = vunpack.c.l.b16 %v1453
      %v1483 = vunpack.c.l.b16 %v1457
      %v1484 = vunpack.c.l.b16 %v1461
      %v1485 = vunpack.c.l.b16 %v1465
      %v1486 = vunpack.c.l.b16 %v1469
      %v1487 = vunpack.c.l.b16 %v1473
      %v1488 = vpack.c.b16 %v1481, %v1480
      %v1489 = vpack.c.b16 %v1483, %v1482
      %v1490 = vpack.c.b16 %v1485, %v1484
      %v1491 = vpack.c.b16 %v1487, %v1486
      %v1497 = vunpack.c.l.b16 %v1475
      %v1498 = vunpack.c.l.b16 %v1476
      %v1499 = vunpack.c.l.b16 %v1477
      %v1500 = vunpack.c.l.b16 %v1478
      %v1501 = vunpack.c.l.b16 %v1479
      %v1502 = vpack.c.b16 %v1498, %v1497
      %v1503 = vpack.c.b16 %v1500, %v1499
      %v1504 = vpack.c.b16 %v1501, %v1501
      %v1508 = vsel %vm378, %v1488, 0
      %v1511 = vsel %vm378, %v1489, 0
      %v1514 = vsel %vm378, %v1490, 0
      %v1517 = vsel %vm378, %v1491, 0
      %v1520 = vsel %vm391, %v1504, 0
      %1522 = vmatpush.bf16.msra.mxu0 0
      %1523 = vmatpush.bf16.msra.mxu0 0
      %1524 = vmatpush.bf16.msra.mxu0 0
      %1525 = vmatpush.bf16.msra.mxu0 0
      %1526 = vmatpush.bf16.msra.mxu0 0
      %1527 = vmatpush.bf16.msra.mxu0 %v1520
      %1528 = vmatpush.bf16.msra.mxu0 %v1503
      %1529 = vmatpush.bf16.msra.mxu0 %v1502
      %1530 = vmatmul.bf16.gmra.mxu0 %v1508
      %v1531 = vpop.f32.mrf.mxu0
      %v1532 = vadd.f32 0.0, %v1531
      %v1533 = vpop.f32.mrf.mxu0
      %v1534 = vadd.f32 0.0, %v1533
      %1535 = vmatmul.bf16.gmra.mxu0 %v1511
      %v1536 = vpop.f32.mrf.mxu0
      %v1537 = vadd.f32 0.0, %v1536
      %v1538 = vpop.f32.mrf.mxu0
      %v1539 = vadd.f32 0.0, %v1538
      %1540 = vmatmul.bf16.gmra.mxu0 %v1514
      %v1541 = vpop.f32.mrf.mxu0
      %v1542 = vadd.f32 0.0, %v1541
      %v1543 = vpop.f32.mrf.mxu0
      %v1544 = vadd.f32 0.0, %v1543
      %1545 = vmatmul.bf16.gmra.mxu0 %v1517
      %v1546 = vpop.f32.mrf.mxu0
      %v1547 = vadd.f32 0.0, %v1546
      %v1548 = vpop.f32.mrf.mxu0
      %v1549 = vadd.f32 0.0, %v1548
      %1550 = vdwg.mxu0
      %v1551 = vadd.f32 %v1410, %v1532
      %v1552 = vadd.f32 %v1411, %v1534
      %v1553 = vadd.f32 %v1412, %v1537
      %v1554 = vadd.f32 %v1413, %v1539
      %v1555 = vadd.f32 %v1414, %v1542
      %v1556 = vadd.f32 %v1415, %v1544
      %v1557 = vadd.f32 %v1416, %v1547
      %v1558 = vadd.f32 %v1417, %v1549
      %v1559 = vld [vmem:[%s2] sm:$0x1]
      %v1561 = vperm.slane %v1559, 0
      %v1563 = vadd.f32 %v1551, %v1561
      %v1564 = vadd.f32 %v1552, %v1561
      %v1565 = vadd.f32 %v1553, %v1561
      %v1566 = vadd.f32 %v1554, %v1561
      %v1567 = vadd.f32 %v1555, %v1561
      %v1568 = vadd.f32 %v1556, %v1561
      %v1569 = vadd.f32 %v1557, %v1561
      %v1570 = vadd.f32 %v1558, %v1561
      %v1571 = vmax.f32 %v1563, 0.0
      %v1572 = vmax.f32 %v1564, 0.0
      %v1573 = vmax.f32 %v1565, 0.0
      %v1574 = vmax.f32 %v1566, 0.0
      %v1575 = vmax.f32 %v1567, 0.0
      %v1576 = vmax.f32 %v1568, 0.0
      %v1577 = vmax.f32 %v1569, 0.0
      %v1578 = vmax.f32 %v1570, 0.0
      %vm1579 = vcmask 523264
      %1580 = vst.msk [vmem:[%s206] sm:$0xff] %vm1579, %v1571
      %1581 = vst.msk [vmem:[%s206 + $0x8] sm:$0xff] %vm1579, %v1572
      %1582 = vst.msk [vmem:[%s206 + $0x10] sm:$0xff] %vm1579, %v1573
      %1583 = vst.msk [vmem:[%s206 + $0x18] sm:$0xff] %vm1579, %v1574
      %1584 = vst.msk [vmem:[%s206 + $0x20] sm:$0xff] %vm1579, %v1575
      %1585 = vst.msk [vmem:[%s206 + $0x28] sm:$0xff] %vm1579, %v1576
      %1586 = vst.msk [vmem:[%s206 + $0x30] sm:$0xff] %vm1579, %v1577
      %1587 = vst.msk [vmem:[%s206 + $0x38] sm:$0xff] %vm1579, %v1578
      %s1588 = smul.u32 8, %s19
      %p1589 = scmp.lt.s32.totalorder %s18, 1
      %s1590 = scalar_select %p1589, %s18, 1
      %p1591 = scmp.lt.s32.totalorder %s1588, 7
      %s1592 = scalar_select %p1591, %s1588, 7
      %s1593 = smul.addr %s1590, 8
      %s1594 = sadd.s32 %s1592, %s1593
      %s1595 = smul.addr %s1594, 8
      %s1596 = scalar_lea.vmem %s3, %s1595
      // Predicated region
      $region33: #{base_conv_forward.1} parent=31 // pred_check
        %p1597 = pneg %p116
      $region34: #{base_conv_forward.1} parent=31 // pred_check_branch
        %1599 = sbr.rel (%p1597) target = $region36
      $region35: #{base_conv_forward.1} parent=31 // pred_region
        %s1600 = smul.u32 8, %s19
      $region36: #{base_conv_forward.1} parent=31 // pred_fallthru
        _
    $region32: #{base_conv_forward.1} parent=5 // pred_fallthru
      _
    %p1601 = scmp.le.s32.totalorder 2, %s9
    // Predicated region
    $region37: #{base_conv_forward.1} parent=5 // pred_check
      %p1602 = pneg %p1601
    $region38: #{base_conv_forward.1} parent=5 // pred_check_branch
      %1604 = sbr.rel (%p1602) target = $region40
    $region39: #{base_conv_forward.1} parent=5 // pred_region
      %s1605 = ssub.s32 %s9, 2
      // Predicated region
      $region41: #{base_conv_forward.1} parent=39 // pred_check
        %p1606 = pneg %p122
      $region42: #{base_conv_forward.1} parent=39 // pred_check_branch
        %1608 = sbr.rel (%p1606) target = $region44
      $region43: #{base_conv_forward.1} parent=39 // pred_region
        %s1609 = smul.u32 8, %s21
        %p1610 = scmp.lt.s32.totalorder %s20, 1
        %s1611 = scalar_select %p1610, %s20, 1
        %p1612 = scmp.lt.s32.totalorder %s1609, 7
        %s1613 = scalar_select %p1612, %s1609, 7
        %s1614 = smul.addr %s1611, 8
        %s1615 = sadd.s32 %s1613, %s1614
        %s1616 = smul.addr %s1615, 8
        %s1617 = scalar_lea.vmem %s3, %s1616
      $region44: #{base_conv_forward.1} parent=39 // pred_fallthru
        _
    $region40: #{base_conv_forward.1} parent=5 // pred_fallthru
      _
  $region6: #{base_conv_forward.1} parent=0 // loop_footer
    %s13 = sadd.s32 1, %s9
  $region7: #{base_conv_forward.1} parent=0 // loop_footer_branch
    %8 = sbr.rel target = $region3
  $region8: #{base_conv_forward.1} parent=0 // loop_exit
    _

</llo_original>
